<compile_context>
chip_gen: v7x
topology: tpu7x:2x2x1
jax: 0.10.0
libtpu: 0.0.40
codegen_flags: <defaults>
</compile_context>

<pallas_src>
import jax
import jax.numpy as jnp
from jax import lax
from jax.experimental import pallas as pl
from jax.experimental.pallas import tpu as pltpu

HIDDEN = 768  # classifier_hidden_size in the PyTorch module

# Contract the last axis of both operands: h[B, K] . w[N, K] -> [B, N]
# (x @ w.T with w kept in PyTorch (out, in) layout).  Used only for the tiny
# [num_label, 768] output weight, which stays lane-dense this way.
_NT_DIMS = (((1,), (1,)), ((), ()))


def _classifier_kernel(feat_ref, w1_ref, b1_ref, w2_ref, b2_ref, o_ref):
    # feat_ref: [B, s_blk, H] f32   leading sequence rows (CLS at position 0)
    # w1_ref:   [H, H]  bf16  dense weight, pre-transposed to (in, out)
    # b1_ref:   [1, H]  f32   dense bias
    # w2_ref:   [L, H]  bf16  output weight, native PyTorch (out, in) layout
    # b2_ref:   [1, L]  f32   output bias
    # o_ref:    [B, L]  f32   logits
    x = feat_ref[:, 0, :].astype(jnp.bfloat16)            # CLS token -> bf16 for MXU
    # dropout (p=0.1) is identity at inference -- skipped
    h = jnp.dot(x, w1_ref[...],
                preferred_element_type=jnp.float32) + b1_ref[...]
    h = jnp.tanh(h)                                        # f32 tanh (EUP)
    # second dropout: identity at inference -- skipped
    out = lax.dot_general(h.astype(jnp.bfloat16), w2_ref[...], _NT_DIMS,
                          preferred_element_type=jnp.float32) + b2_ref[...]
    o_ref[...] = out.astype(o_ref.dtype)


def simple_classifier(features, w_dense, b_dense, w_out, b_out):
    """features: [B, S, H] float32 (CLS token at sequence position 0).
    w_dense: [H, H] (PyTorch layout: (out, in)); b_dense: [H]
    w_out:   [L, H] (PyTorch layout: (out, in)); b_out:   [L]
    Returns logits [B, L]."""
    B, S, H = features.shape
    L = w_out.shape[0]
    assert H == w_dense.shape[0] == w_dense.shape[1] == w_out.shape[1]

    # One-time weight prep (constants in a real model: folded at load time).
    w1 = w_dense.T.astype(jnp.bfloat16)    # [H, H] (in, out): sublane contraction
    w2 = w_out.astype(jnp.bfloat16)        # [L, H] (out, in): lane-dense, NT in-kernel
    b1 = b_dense.reshape(1, H)             # [1, H]
    b2 = b_out.reshape(1, L)               # [1, L]

    # Fetch only the first sublane tile of the sequence axis (CLS is row 0).
    s_blk = min(S, 8)

    cost = pl.CostEstimate(
        flops=2 * B * H * H + 2 * B * H * L,
        transcendentals=B * H,
        bytes_accessed=(B * s_blk * H * 4        # CLS tile (f32)
                        + H * H * 2 + H * 4      # dense weight (bf16) + bias
                        + L * H * 2 + L * 4      # output weight (bf16) + bias
                        + B * L * 4),            # logits
    )

    return pl.pallas_call(
        _classifier_kernel,
        out_shape=jax.ShapeDtypeStruct((B, L), features.dtype),
        in_specs=[
            pl.BlockSpec((B, s_blk, H), lambda: (0, 0, 0)),
            pl.BlockSpec((H, H), lambda: (0, 0)),
            pl.BlockSpec((1, H), lambda: (0, 0)),
            pl.BlockSpec((L, H), lambda: (0, 0)),
            pl.BlockSpec((1, L), lambda: (0, 0)),
        ],
        out_specs=pl.BlockSpec((B, L), lambda: (0, 0)),
        compiler_params=pltpu.CompilerParams(vmem_limit_bytes=4 << 20),
        cost_estimate=cost,
    )(features, w1, b1, w2, b2)


def _reference(features, w_dense, b_dense, w_out, b_out):
    x = features[:, 0, :]
    x = jnp.tanh(x @ w_dense.T + b_dense)
    return x @ w_out.T + b_out


if __name__ == "__main__":
    key = jax.random.PRNGKey(0)
    k_feat, k_w1, k_b1, k_w2, k_b2 = jax.random.split(key, 5)

    B, S, H = 2, 8, HIDDEN
    num_label = 4

    features = jax.random.normal(k_feat, (B, S, H), dtype=jnp.float32)
    # Deterministic parameter init (synthetic; matches nn.Linear shapes).
    w_dense = jax.random.normal(k_w1, (H, H), dtype=jnp.float32) * 0.02
    b_dense = jax.random.normal(k_b1, (H,), dtype=jnp.float32) * 0.02
    w_out = jax.random.normal(k_w2, (num_label, H), dtype=jnp.float32) * 0.02
    b_out = jax.random.normal(k_b2, (num_label,), dtype=jnp.float32) * 0.02

    logits = simple_classifier(features, w_dense, b_dense, w_out, b_out)
    jax.block_until_ready(logits)

    ref = _reference(features, w_dense, b_dense, w_out, b_out)
    assert logits.shape == (B, num_label)
    # bf16 weights introduce small drift vs. the f32 reference.
    assert jnp.allclose(logits, ref, atol=2e-2, rtol=2e-2)

    print("KERNEL_OK")
</pallas_src>

<mosaic_0001>
module attributes {stable_mosaic.version = 11 : i64} {
  func.func @_classifier_kernel(%arg0: memref<2x8x768xf32, #tpu.memory_space<vmem>>, %arg1: memref<768x768xbf16, #tpu.memory_space<vmem>>, %arg2: memref<1x768xf32, #tpu.memory_space<vmem>>, %arg3: memref<4x768xbf16, #tpu.memory_space<vmem>>, %arg4: memref<1x4xf32, #tpu.memory_space<vmem>>, %arg5: memref<2x4xf32, #tpu.memory_space<vmem>>) attributes {dimension_semantics = [], scalar_prefetch = 0 : i64, scratch_operands = 0 : i64, tpu.core_type = #tpu.core_type<tc>} {
    %c0 = arith.constant 0 : index
    %c0_0 = arith.constant 0 : index
    %c0_1 = arith.constant 0 : index
    %0 = vector.load %arg0[%c0, %c0_0, %c0_1] : memref<2x8x768xf32, #tpu.memory_space<vmem>>, vector<2x1x768xf32>
    %1 = vector.shape_cast %0 : vector<2x1x768xf32> to vector<2x768xf32>
    %2 = arith.truncf %1 : vector<2x768xf32> to vector<2x768xbf16>
    %c0_2 = arith.constant 0 : index
    %c0_3 = arith.constant 0 : index
    %3 = vector.load %arg1[%c0_2, %c0_3] : memref<768x768xbf16, #tpu.memory_space<vmem>>, vector<768x768xbf16>
    %cst = arith.constant dense<0.000000e+00> : vector<2x768xf32>
    %4 = tpu.matmul %2, %3, %cst {dimension_numbers = #tpu.dot_dimension_numbers<[1], [0], [0], [1], [0, 0, 1, 1], [], []>} : vector<2x768xbf16>, vector<768x768xbf16>, vector<2x768xf32> -> vector<2x768xf32>
    %c0_4 = arith.constant 0 : index
    %c0_5 = arith.constant 0 : index
    %5 = vector.load %arg2[%c0_4, %c0_5] : memref<1x768xf32, #tpu.memory_space<vmem>>, vector<1x768xf32>
    %6 = vector.broadcast %5 : vector<1x768xf32> to vector<2x768xf32>
    %7 = arith.addf %4, %6 : vector<2x768xf32>
    %8 = math.tanh %7 : vector<2x768xf32>
    %9 = arith.truncf %8 : vector<2x768xf32> to vector<2x768xbf16>
    %c0_6 = arith.constant 0 : index
    %c0_7 = arith.constant 0 : index
    %10 = vector.load %arg3[%c0_6, %c0_7] : memref<4x768xbf16, #tpu.memory_space<vmem>>, vector<4x768xbf16>
    %cst_8 = arith.constant dense<0.000000e+00> : vector<2x4xf32>
    %11 = tpu.matmul %9, %10, %cst_8 {dimension_numbers = #tpu.dot_dimension_numbers<[1], [1], [0], [0], [0, 0, 1, 0], [], []>} : vector<2x768xbf16>, vector<4x768xbf16>, vector<2x4xf32> -> vector<2x4xf32>
    %c0_9 = arith.constant 0 : index
    %c0_10 = arith.constant 0 : index
    %12 = vector.load %arg4[%c0_9, %c0_10] : memref<1x4xf32, #tpu.memory_space<vmem>>, vector<1x4xf32>
    %13 = vector.broadcast %12 : vector<1x4xf32> to vector<2x4xf32>
    %14 = arith.addf %11, %13 : vector<2x4xf32>
    %c0_11 = arith.constant 0 : index
    %c0_12 = arith.constant 0 : index
    %15 = vector.load %arg5[%c0_11, %c0_12] : memref<2x4xf32, #tpu.memory_space<vmem>>, vector<2x4xf32>
    tpu.vector_store %arg5[%c0_11, %c0_12], %14 {strides = array<i32>} : memref<2x4xf32, #tpu.memory_space<vmem>>, vector<2x4xf32>,
    return
  }
}

</mosaic_0001>

<llo_original>
// kernel: tpu_custom_call.1
$region0: #{tpu_custom_call.1}
  #allocation0 [shape = 'u32[]', space=smem, size = 0x4, offset = 0x4, fixed_abs, tag = 'smem constant byte address 0x4 - core index']
  #allocation1 [shape = 'u32[144,128]{1,0:T(1,128)}', space=vmem, size = 0x12000, scoped, tag = 'internal scratch']
  %s0 = inlined_call_operand.hbm [shape: f32[2,8,768], index: 0, kind: input, shape index: {}]
  %s1 = inlined_call_operand.hbm [shape: bf16[768,768], index: 1, kind: input, shape index: {}]
  %s2 = inlined_call_operand.hbm [shape: f32[1,768], index: 2, kind: input, shape index: {}]
  %s3 = inlined_call_operand.hbm [shape: bf16[4,768], index: 3, kind: input, shape index: {}]
  %s4 = inlined_call_operand.hbm [shape: f32[1,4], index: 4, kind: input, shape index: {}]
  %s5 = inlined_call_operand.hbm [shape: f32[2,4], index: 5, kind: output, shape index: {}]
  %s6 = sld [smem:[#allocation0]]
  $region50: #{tpu_custom_call.1} parent=0
    _
  %s8 = ssub.s32 1, %s6
  %s9 = scalar_select 0, %s8, %s6
  $region1: #{tpu_custom_call.1} parent=0
    #allocation2 [shape = 'u8[49152]{0}', space=vmem, size = 0xc000, scoped, tag = 'input window, operand 0, single buffered']
    #allocation3 [shape = 's32[1]{0}', space=sflag, size = 0x4, scoped, tag = 'scoped memory for tpu_custom_call.1']
    #allocation4 [shape = 's32[1]{0}', space=sflag, size = 0x4, scoped, tag = 'scoped memory for tpu_custom_call.1']
    #allocation5 [shape = 'u8[1179648]{0}', space=vmem, size = 0x120000, scoped, tag = 'input window, operand 1, single buffered']
    #allocation6 [shape = 's32[1]{0}', space=sflag, size = 0x4, scoped, tag = 'scoped memory for tpu_custom_call.1']
    #allocation7 [shape = 'u8[3072]{0}', space=vmem, size = 0xc00, scoped, tag = 'input window, operand 2, single buffered']
    #allocation8 [shape = 'u8[6144]{0}', space=vmem, size = 0x1800, scoped, tag = 'input window, operand 3, single buffered']
    #allocation9 [shape = 's32[1]{0}', space=sflag, size = 0x4, scoped, tag = 'scoped memory for tpu_custom_call.1']
    #allocation10 [shape = 'u8[512]{0}', space=vmem, size = 0x400, scoped, tag = 'input window, operand 4, single buffered']
    #allocation11 [shape = 'u8[1024]{0}', space=vmem, size = 0x400, scoped, tag = 'output window, operand 0, single buffered']
    %10 = vsyncpa [#allocation3], 0
    %11 = vsyncpa [#allocation6], 0
    %12 = vsyncpa [#allocation9], 0
    %13 = vsyncpa [#allocation4], 0
    // Predicated region
    $region2: #{tpu_custom_call.1} parent=1 // pred_check
      _
    $region3: #{tpu_custom_call.1} parent=1 // pred_check_branch
      %15 = sbr.rel (0) target = $region5
    $region4: #{tpu_custom_call.1} parent=1 // pred_region
      %s17 = ssub.s32 1536, 1536
      %18 = vsyncadd [#allocation3], %s17
      %s19 = sshll.u32 [#allocation2], 4
      %s20 = int_to_ptr.vmem [resolvable:$true] %s19
      %25 = dma.hbm_to_vmem [thread:$0]  %s0, 1536, %s20, [#allocation3], 768, 768, 48
    $region5: #{tpu_custom_call.1} parent=1 // pred_fallthru
      _
    // Predicated region
    $region6: #{tpu_custom_call.1} parent=1 // pred_check
      _
    $region7: #{tpu_custom_call.1} parent=1 // pred_check_branch
      %27 = sbr.rel (0) target = $region9
    $region8: #{tpu_custom_call.1} parent=1 // pred_region
      %s29 = ssub.s32 36864, 36864
      %30 = vsyncadd [#allocation6], %s29
      %s31 = sshll.u32 [#allocation5], 4
      %s32 = int_to_ptr.vmem [resolvable:$true] %s31
      %37 = dma.hbm_to_vmem [thread:$0]  %s1, 36864, %s32, [#allocation6], 384, 384, 24
    $region9: #{tpu_custom_call.1} parent=1 // pred_fallthru
      _
    // Predicated region
    $region10: #{tpu_custom_call.1} parent=1 // pred_check
      _
    $region11: #{tpu_custom_call.1} parent=1 // pred_check_branch
      %39 = sbr.rel (0) target = $region13
    $region12: #{tpu_custom_call.1} parent=1 // pred_region
      %s41 = ssub.s32 96, 96
      %42 = vsyncadd [#allocation6], %s41
      %s44 = sshll.u32 [#allocation7], 4
      %s45 = int_to_ptr.vmem [resolvable:$true] %s44
      %47 = dma.hbm_to_vmem [thread:$0]  %s2, 96, %s45, [#allocation6]
    $region13: #{tpu_custom_call.1} parent=1 // pred_fallthru
      _
    // Predicated region
    $region14: #{tpu_custom_call.1} parent=1 // pred_check
      _
    $region15: #{tpu_custom_call.1} parent=1 // pred_check_branch
      %49 = sbr.rel (0) target = $region17
    $region16: #{tpu_custom_call.1} parent=1 // pred_region
      %s51 = ssub.s32 192, 192
      %52 = vsyncadd [#allocation9], %s51
      %s54 = sshll.u32 [#allocation8], 4
      %s55 = int_to_ptr.vmem [resolvable:$true] %s54
      %57 = dma.hbm_to_vmem [thread:$0]  %s3, 192, %s55, [#allocation9]
    $region17: #{tpu_custom_call.1} parent=1 // pred_fallthru
      _
    // Predicated region
    $region18: #{tpu_custom_call.1} parent=1 // pred_check
      _
    $region19: #{tpu_custom_call.1} parent=1 // pred_check_branch
      %59 = sbr.rel (0) target = $region21
    $region20: #{tpu_custom_call.1} parent=1 // pred_region
      %s61 = ssub.s32 16, 16
      %62 = vsyncadd [#allocation9], %s61
      %s64 = sshll.u32 [#allocation10], 4
      %s65 = int_to_ptr.vmem [resolvable:$true] %s64
      %67 = dma.hbm_to_vmem [thread:$0]  %s4, 16, %s65, [#allocation9]
    $region21: #{tpu_custom_call.1} parent=1 // pred_fallthru
      _
    // Predicated region
    $region22: #{tpu_custom_call.1} parent=1 // pred_check
      _
    $region23: #{tpu_custom_call.1} parent=1 // pred_check_branch
      %69 = sbr.rel (0) target = $region25
    $region24: #{tpu_custom_call.1} parent=1 // pred_region
      %70 = dma.done [#allocation3], 1536
    $region25: #{tpu_custom_call.1} parent=1 // pred_fallthru
      _
    // Predicated region
    $region26: #{tpu_custom_call.1} parent=1 // pred_check
      _
    $region27: #{tpu_custom_call.1} parent=1 // pred_check_branch
      %72 = sbr.rel (0) target = $region29
    $region28: #{tpu_custom_call.1} parent=1 // pred_region
      %73 = dma.done [#allocation6], 36864
    $region29: #{tpu_custom_call.1} parent=1 // pred_fallthru
      _
    // Predicated region
    $region30: #{tpu_custom_call.1} parent=1 // pred_check
      _
    $region31: #{tpu_custom_call.1} parent=1 // pred_check_branch
      %75 = sbr.rel (0) target = $region33
    $region32: #{tpu_custom_call.1} parent=1 // pred_region
      %76 = dma.done [#allocation6], 96
    $region33: #{tpu_custom_call.1} parent=1 // pred_fallthru
      _
    // Predicated region
    $region34: #{tpu_custom_call.1} parent=1 // pred_check
      _
    $region35: #{tpu_custom_call.1} parent=1 // pred_check_branch
      %78 = sbr.rel (0) target = $region37
    $region36: #{tpu_custom_call.1} parent=1 // pred_region
      %79 = dma.done [#allocation9], 192
    $region37: #{tpu_custom_call.1} parent=1 // pred_fallthru
      _
    // Predicated region
    $region38: #{tpu_custom_call.1} parent=1 // pred_check
      _
    $region39: #{tpu_custom_call.1} parent=1 // pred_check_branch
      %81 = sbr.rel (0) target = $region41
    $region40: #{tpu_custom_call.1} parent=1 // pred_region
      %82 = dma.done [#allocation9], 16
    $region41: #{tpu_custom_call.1} parent=1 // pred_fallthru
      _
    %v84 = vld [vmem:[#allocation2] ss:$8 sm:$0xf]
    %v85 = vld [vmem:[#allocation2] ss:$8 sm:$0x30]
    %v86 = vor.u32 %v84, %v85
    %s87 = scalar_lea.vmem [#allocation2], 48
    %v88 = vld [vmem:[%s87] ss:$8 sm:$0xf]
    %v89 = vld [vmem:[%s87] ss:$8 sm:$0x30]
    %v90 = vor.u32 %v88, %v89
    %v93 = vlaneseq
    %v94 = vshrl.u32 %v93, 7
    %v95 = vsub.s32 0, %v94
    %v96 = vrot.slane %v86, %v95
    %v97 = vlaneseq
    %v98 = vshrl.u32 %v97, 7
    %v99 = vsub.s32 1, %v98
    %v100 = vrot.slane %v86, %v99
    %v101 = vlaneseq
    %v102 = vshrl.u32 %v101, 7
    %v103 = vsub.s32 2, %v102
    %v104 = vrot.slane %v86, %v103
    %v105 = vlaneseq
    %v106 = vshrl.u32 %v105, 7
    %v107 = vsub.s32 3, %v106
    %v108 = vrot.slane %v86, %v107
    %v109 = vlaneseq
    %v110 = vshrl.u32 %v109, 7
    %v111 = vsub.s32 4, %v110
    %v112 = vrot.slane %v86, %v111
    %v113 = vlaneseq
    %v114 = vshrl.u32 %v113, 7
    %v115 = vsub.s32 5, %v114
    %v116 = vrot.slane %v86, %v115
    %v117 = vlaneseq
    %v118 = vshrl.u32 %v117, 7
    %v119 = vsub.s32 0, %v118
    %v120 = vrot.slane %v90, %v119
    %v121 = vlaneseq
    %v122 = vshrl.u32 %v121, 7
    %v123 = vsub.s32 1, %v122
    %v124 = vrot.slane %v90, %v123
    %v125 = vlaneseq
    %v126 = vshrl.u32 %v125, 7
    %v127 = vsub.s32 2, %v126
    %v128 = vrot.slane %v90, %v127
    %v129 = vlaneseq
    %v130 = vshrl.u32 %v129, 7
    %v131 = vsub.s32 3, %v130
    %v132 = vrot.slane %v90, %v131
    %v133 = vlaneseq
    %v134 = vshrl.u32 %v133, 7
    %v135 = vsub.s32 4, %v134
    %v136 = vrot.slane %v90, %v135
    %v137 = vlaneseq
    %v138 = vshrl.u32 %v137, 7
    %v139 = vsub.s32 5, %v138
    %v140 = vrot.slane %v90, %v139
    %v153 = vpack.c.bf16 %v96, %v96
    %v154 = vpack.c.bf16 %v100, %v100
    %v155 = vpack.c.bf16 %v104, %v104
    %v156 = vpack.c.bf16 %v108, %v108
    %v157 = vpack.c.bf16 %v112, %v112
    %v158 = vpack.c.bf16 %v116, %v116
    %v159 = vpack.c.bf16 %v120, %v120
    %v160 = vpack.c.bf16 %v124, %v124
    %v161 = vpack.c.bf16 %v128, %v128
    %v162 = vpack.c.bf16 %v132, %v132
    %v163 = vpack.c.bf16 %v136, %v136
    %v164 = vpack.c.bf16 %v140, %v140
    %v165 = vld [vmem:[#allocation5] sm:$0xff]
    %v166 = vld [vmem:[#allocation5 + $0x8] sm:$0xff]
    %v167 = vld [vmem:[#allocation5 + $0x10] sm:$0xff]
    %v168 = vld [vmem:[#allocation5 + $0x18] sm:$0xff]
    %v169 = vld [vmem:[#allocation5 + $0x20] sm:$0xff]
    %v170 = vld [vmem:[#allocation5 + $0x28] sm:$0xff]
    %v171 = vld [vmem:[#allocation5 + $0x30] sm:$0xff]
    %v172 = vld [vmem:[#allocation5 + $0x38] sm:$0xff]
    %v173 = vld [vmem:[#allocation5 + $0x40] sm:$0xff]
    %v174 = vld [vmem:[#allocation5 + $0x48] sm:$0xff]
    %v175 = vld [vmem:[#allocation5 + $0x50] sm:$0xff]
    %v176 = vld [vmem:[#allocation5 + $0x58] sm:$0xff]
    %v177 = vld [vmem:[#allocation5 + $0x60] sm:$0xff]
    %v178 = vld [vmem:[#allocation5 + $0x68] sm:$0xff]
    %v179 = vld [vmem:[#allocation5 + $0x70] sm:$0xff]
    %v180 = vld [vmem:[#allocation5 + $0x78] sm:$0xff]
    %v181 = vld [vmem:[#allocation5 + $0x80] sm:$0xff]
    %v182 = vld [vmem:[#allocation5 + $0x88] sm:$0xff]
    %v183 = vld [vmem:[#allocation5 + $0x90] sm:$0xff]
    %v184 = vld [vmem:[#allocation5 + $0x98] sm:$0xff]
    %v185 = vld [vmem:[#allocation5 + $0xa0] sm:$0xff]
    %v186 = vld [vmem:[#allocation5 + $0xa8] sm:$0xff]
    %v187 = vld [vmem:[#allocation5 + $0xb0] sm:$0xff]
    %v188 = vld [vmem:[#allocation5 + $0xb8] sm:$0xff]
    %v189 = vld [vmem:[#allocation5 + $0xc0] sm:$0xff]
    %v190 = vld [vmem:[#allocation5 + $0xc8] sm:$0xff]
    %v191 = vld [vmem:[#allocation5 + $0xd0] sm:$0xff]
    %v192 = vld [vmem:[#allocation5 + $0xd8] sm:$0xff]
    %v193 = vld [vmem:[#allocation5 + $0xe0] sm:$0xff]
    %v194 = vld [vmem:[#allocation5 + $0xe8] sm:$0xff]
    %v195 = vld [vmem:[#allocation5 + $0xf0] sm:$0xff]
    %v196 = vld [vmem:[#allocation5 + $0xf8] sm:$0xff]
    %v197 = vld [vmem:[#allocation5 + $0x100] sm:$0xff]
    %v198 = vld [vmem:[#allocation5 + $0x108] sm:$0xff]
    %v199 = vld [vmem:[#allocation5 + $0x110] sm:$0xff]
    %v200 = vld [vmem:[#allocation5 + $0x118] sm:$0xff]
    %v201 = vld [vmem:[#allocation5 + $0x120] sm:$0xff]
    %v202 = vld [vmem:[#allocation5 + $0x128] sm:$0xff]
    %v203 = vld [vmem:[#allocation5 + $0x130] sm:$0xff]
    %v204 = vld [vmem:[#allocation5 + $0x138] sm:$0xff]
    %v205 = vld [vmem:[#allocation5 + $0x140] sm:$0xff]
    %v206 = vld [vmem:[#allocation5 + $0x148] sm:$0xff]
    %v207 = vld [vmem:[#allocation5 + $0x150] sm:$0xff]
    %v208 = vld [vmem:[#allocation5 + $0x158] sm:$0xff]
    %v209 = vld [vmem:[#allocation5 + $0x160] sm:$0xff]
    %v210 = vld [vmem:[#allocation5 + $0x168] sm:$0xff]
    %v211 = vld [vmem:[#allocation5 + $0x170] sm:$0xff]
    %v212 = vld [vmem:[#allocation5 + $0x178] sm:$0xff]
    %v213 = vld [vmem:[#allocation5 + $0x180] sm:$0xff]
    %v214 = vld [vmem:[#allocation5 + $0x188] sm:$0xff]
    %v215 = vld [vmem:[#allocation5 + $0x190] sm:$0xff]
    %v216 = vld [vmem:[#allocation5 + $0x198] sm:$0xff]
    %v217 = vld [vmem:[#allocation5 + $0x1a0] sm:$0xff]
    %v218 = vld [vmem:[#allocation5 + $0x1a8] sm:$0xff]
    %v219 = vld [vmem:[#allocation5 + $0x1b0] sm:$0xff]
    %v220 = vld [vmem:[#allocation5 + $0x1b8] sm:$0xff]
    %v221 = vld [vmem:[#allocation5 + $0x1c0] sm:$0xff]
    %v222 = vld [vmem:[#allocation5 + $0x1c8] sm:$0xff]
    %v223 = vld [vmem:[#allocation5 + $0x1d0] sm:$0xff]
    %v224 = vld [vmem:[#allocation5 + $0x1d8] sm:$0xff]
    %v225 = vld [vmem:[#allocation5 + $0x1e0] sm:$0xff]
    %v226 = vld [vmem:[#allocation5 + $0x1e8] sm:$0xff]
    %v227 = vld [vmem:[#allocation5 + $0x1f0] sm:$0xff]
    %v228 = vld [vmem:[#allocation5 + $0x1f8] sm:$0xff]
    %v229 = vld [vmem:[#allocation5 + $0x200] sm:$0xff]
    %v230 = vld [vmem:[#allocation5 + $0x208] sm:$0xff]
    %v231 = vld [vmem:[#allocation5 + $0x210] sm:$0xff]
    %v232 = vld [vmem:[#allocation5 + $0x218] sm:$0xff]
    %v233 = vld [vmem:[#allocation5 + $0x220] sm:$0xff]
    %v234 = vld [vmem:[#allocation5 + $0x228] sm:$0xff]
    %v235 = vld [vmem:[#allocation5 + $0x230] sm:$0xff]
    %v236 = vld [vmem:[#allocation5 + $0x238] sm:$0xff]
    %v237 = vld [vmem:[#allocation5 + $0x240] sm:$0xff]
    %v238 = vld [vmem:[#allocation5 + $0x248] sm:$0xff]
    %v239 = vld [vmem:[#allocation5 + $0x250] sm:$0xff]
    %v240 = vld [vmem:[#allocation5 + $0x258] sm:$0xff]
    %v241 = vld [vmem:[#allocation5 + $0x260] sm:$0xff]
    %v242 = vld [vmem:[#allocation5 + $0x268] sm:$0xff]
    %v243 = vld [vmem:[#allocation5 + $0x270] sm:$0xff]
    %v244 = vld [vmem:[#allocation5 + $0x278] sm:$0xff]
    %v245 = vld [vmem:[#allocation5 + $0x280] sm:$0xff]
    %v246 = vld [vmem:[#allocation5 + $0x288] sm:$0xff]
    %v247 = vld [vmem:[#allocation5 + $0x290] sm:$0xff]
    %v248 = vld [vmem:[#allocation5 + $0x298] sm:$0xff]
    %v249 = vld [vmem:[#allocation5 + $0x2a0] sm:$0xff]
    %v250 = vld [vmem:[#allocation5 + $0x2a8] sm:$0xff]
    %v251 = vld [vmem:[#allocation5 + $0x2b0] sm:$0xff]
    %v252 = vld [vmem:[#allocation5 + $0x2b8] sm:$0xff]
    %v253 = vld [vmem:[#allocation5 + $0x2c0] sm:$0xff]
    %v254 = vld [vmem:[#allocation5 + $0x2c8] sm:$0xff]
    %v255 = vld [vmem:[#allocation5 + $0x2d0] sm:$0xff]
    %v256 = vld [vmem:[#allocation5 + $0x2d8] sm:$0xff]
    %v257 = vld [vmem:[#allocation5 + $0x2e0] sm:$0xff]
    %v258 = vld [vmem:[#allocation5 + $0x2e8] sm:$0xff]
    %v259 = vld [vmem:[#allocation5 + $0x2f0] sm:$0xff]
    %v260 = vld [vmem:[#allocation5 + $0x2f8] sm:$0xff]
    %v261 = vld [vmem:[#allocation5 + $0x300] sm:$0xff]
    %v262 = vld [vmem:[#allocation5 + $0x308] sm:$0xff]
    %v263 = vld [vmem:[#allocation5 + $0x310] sm:$0xff]
    %v264 = vld [vmem:[#allocation5 + $0x318] sm:$0xff]
    %v265 = vld [vmem:[#allocation5 + $0x320] sm:$0xff]
    %v266 = vld [vmem:[#allocation5 + $0x328] sm:$0xff]
    %v267 = vld [vmem:[#allocation5 + $0x330] sm:$0xff]
    %v268 = vld [vmem:[#allocation5 + $0x338] sm:$0xff]
    %v269 = vld [vmem:[#allocation5 + $0x340] sm:$0xff]
    %v270 = vld [vmem:[#allocation5 + $0x348] sm:$0xff]
    %v271 = vld [vmem:[#allocation5 + $0x350] sm:$0xff]
    %v272 = vld [vmem:[#allocation5 + $0x358] sm:$0xff]
    %v273 = vld [vmem:[#allocation5 + $0x360] sm:$0xff]
    %v274 = vld [vmem:[#allocation5 + $0x368] sm:$0xff]
    %v275 = vld [vmem:[#allocation5 + $0x370] sm:$0xff]
    %v276 = vld [vmem:[#allocation5 + $0x378] sm:$0xff]
    %v277 = vld [vmem:[#allocation5 + $0x380] sm:$0xff]
    %v278 = vld [vmem:[#allocation5 + $0x388] sm:$0xff]
    %v279 = vld [vmem:[#allocation5 + $0x390] sm:$0xff]
    %v280 = vld [vmem:[#allocation5 + $0x398] sm:$0xff]
    %v281 = vld [vmem:[#allocation5 + $0x3a0] sm:$0xff]
    %v282 = vld [vmem:[#allocation5 + $0x3a8] sm:$0xff]
    %v283 = vld [vmem:[#allocation5 + $0x3b0] sm:$0xff]
    %v284 = vld [vmem:[#allocation5 + $0x3b8] sm:$0xff]
    %v285 = vld [vmem:[#allocation5 + $0x3c0] sm:$0xff]
    %v286 = vld [vmem:[#allocation5 + $0x3c8] sm:$0xff]
    %v287 = vld [vmem:[#allocation5 + $0x3d0] sm:$0xff]
    %v288 = vld [vmem:[#allocation5 + $0x3d8] sm:$0xff]
    %v289 = vld [vmem:[#allocation5 + $0x3e0] sm:$0xff]
    %v290 = vld [vmem:[#allocation5 + $0x3e8] sm:$0xff]
    %v291 = vld [vmem:[#allocation5 + $0x3f0] sm:$0xff]
    %v292 = vld [vmem:[#allocation5 + $0x3f8] sm:$0xff]
    %v293 = vld [vmem:[#allocation5 + $0x400] sm:$0xff]
    %v294 = vld [vmem:[#allocation5 + $0x408] sm:$0xff]
    %v295 = vld [vmem:[#allocation5 + $0x410] sm:$0xff]
    %v296 = vld [vmem:[#allocation5 + $0x418] sm:$0xff]
    %v297 = vld [vmem:[#allocation5 + $0x420] sm:$0xff]
    %v298 = vld [vmem:[#allocation5 + $0x428] sm:$0xff]
    %v299 = vld [vmem:[#allocation5 + $0x430] sm:$0xff]
    %v300 = vld [vmem:[#allocation5 + $0x438] sm:$0xff]
    %v301 = vld [vmem:[#allocation5 + $0x440] sm:$0xff]
    %v302 = vld [vmem:[#allocation5 + $0x448] sm:$0xff]
    %v303 = vld [vmem:[#allocation5 + $0x450] sm:$0xff]
    %v304 = vld [vmem:[#allocation5 + $0x458] sm:$0xff]
    %v305 = vld [vmem:[#allocation5 + $0x460] sm:$0xff]
    %v306 = vld [vmem:[#allocation5 + $0x468] sm:$0xff]
    %v307 = vld [vmem:[#allocation5 + $0x470] sm:$0xff]
    %v308 = vld [vmem:[#allocation5 + $0x478] sm:$0xff]
    %v309 = vld [vmem:[#allocation5 + $0x480] sm:$0xff]
    %v310 = vld [vmem:[#allocation5 + $0x488] sm:$0xff]
    %v311 = vld [vmem:[#allocation5 + $0x490] sm:$0xff]
    %v312 = vld [vmem:[#allocation5 + $0x498] sm:$0xff]
    %v313 = vld [vmem:[#allocation5 + $0x4a0] sm:$0xff]
    %v314 = vld [vmem:[#allocation5 + $0x4a8] sm:$0xff]
    %v315 = vld [vmem:[#allocation5 + $0x4b0] sm:$0xff]
    %v316 = vld [vmem:[#allocation5 + $0x4b8] sm:$0xff]
    %v317 = vld [vmem:[#allocation5 + $0x4c0] sm:$0xff]
    %v318 = vld [vmem:[#allocation5 + $0x4c8] sm:$0xff]
    %v319 = vld [vmem:[#allocation5 + $0x4d0] sm:$0xff]
    %v320 = vld [vmem:[#allocation5 + $0x4d8] sm:$0xff]
    %v321 = vld [vmem:[#allocation5 + $0x4e0] sm:$0xff]
    %v322 = vld [vmem:[#allocation5 + $0x4e8] sm:$0xff]
    %v323 = vld [vmem:[#allocation5 + $0x4f0] sm:$0xff]
    %v324 = vld [vmem:[#allocation5 + $0x4f8] sm:$0xff]
    %v325 = vld [vmem:[#allocation5 + $0x500] sm:$0xff]
    %v326 = vld [vmem:[#allocation5 + $0x508] sm:$0xff]
    %v327 = vld [vmem:[#allocation5 + $0x510] sm:$0xff]
    %v328 = vld [vmem:[#allocation5 + $0x518] sm:$0xff]
    %v329 = vld [vmem:[#allocation5 + $0x520] sm:$0xff]
    %v330 = vld [vmem:[#allocation5 + $0x528] sm:$0xff]
    %v331 = vld [vmem:[#allocation5 + $0x530] sm:$0xff]
    %v332 = vld [vmem:[#allocation5 + $0x538] sm:$0xff]
    %v333 = vld [vmem:[#allocation5 + $0x540] sm:$0xff]
    %v334 = vld [vmem:[#allocation5 + $0x548] sm:$0xff]
    %v335 = vld [vmem:[#allocation5 + $0x550] sm:$0xff]
    %v336 = vld [vmem:[#allocation5 + $0x558] sm:$0xff]
    %v337 = vld [vmem:[#allocation5 + $0x560] sm:$0xff]
    %v338 = vld [vmem:[#allocation5 + $0x568] sm:$0xff]
    %v339 = vld [vmem:[#allocation5 + $0x570] sm:$0xff]
    %v340 = vld [vmem:[#allocation5 + $0x578] sm:$0xff]
    %v341 = vld [vmem:[#allocation5 + $0x580] sm:$0xff]
    %v342 = vld [vmem:[#allocation5 + $0x588] sm:$0xff]
    %v343 = vld [vmem:[#allocation5 + $0x590] sm:$0xff]
    %v344 = vld [vmem:[#allocation5 + $0x598] sm:$0xff]
    %v345 = vld [vmem:[#allocation5 + $0x5a0] sm:$0xff]
    %v346 = vld [vmem:[#allocation5 + $0x5a8] sm:$0xff]
    %v347 = vld [vmem:[#allocation5 + $0x5b0] sm:$0xff]
    %v348 = vld [vmem:[#allocation5 + $0x5b8] sm:$0xff]
    %v349 = vld [vmem:[#allocation5 + $0x5c0] sm:$0xff]
    %v350 = vld [vmem:[#allocation5 + $0x5c8] sm:$0xff]
    %v351 = vld [vmem:[#allocation5 + $0x5d0] sm:$0xff]
    %v352 = vld [vmem:[#allocation5 + $0x5d8] sm:$0xff]
    %v353 = vld [vmem:[#allocation5 + $0x5e0] sm:$0xff]
    %v354 = vld [vmem:[#allocation5 + $0x5e8] sm:$0xff]
    %v355 = vld [vmem:[#allocation5 + $0x5f0] sm:$0xff]
    %v356 = vld [vmem:[#allocation5 + $0x5f8] sm:$0xff]
    %v357 = vld [vmem:[#allocation5 + $0x600] sm:$0xff]
    %v358 = vld [vmem:[#allocation5 + $0x608] sm:$0xff]
    %v359 = vld [vmem:[#allocation5 + $0x610] sm:$0xff]
    %v360 = vld [vmem:[#allocation5 + $0x618] sm:$0xff]
    %v361 = vld [vmem:[#allocation5 + $0x620] sm:$0xff]
    %v362 = vld [vmem:[#allocation5 + $0x628] sm:$0xff]
    %v363 = vld [vmem:[#allocation5 + $0x630] sm:$0xff]
    %v364 = vld [vmem:[#allocation5 + $0x638] sm:$0xff]
    %v365 = vld [vmem:[#allocation5 + $0x640] sm:$0xff]
    %v366 = vld [vmem:[#allocation5 + $0x648] sm:$0xff]
    %v367 = vld [vmem:[#allocation5 + $0x650] sm:$0xff]
    %v368 = vld [vmem:[#allocation5 + $0x658] sm:$0xff]
    %v369 = vld [vmem:[#allocation5 + $0x660] sm:$0xff]
    %v370 = vld [vmem:[#allocation5 + $0x668] sm:$0xff]
    %v371 = vld [vmem:[#allocation5 + $0x670] sm:$0xff]
    %v372 = vld [vmem:[#allocation5 + $0x678] sm:$0xff]
    %v373 = vld [vmem:[#allocation5 + $0x680] sm:$0xff]
    %v374 = vld [vmem:[#allocation5 + $0x688] sm:$0xff]
    %v375 = vld [vmem:[#allocation5 + $0x690] sm:$0xff]
    %v376 = vld [vmem:[#allocation5 + $0x698] sm:$0xff]
    %v377 = vld [vmem:[#allocation5 + $0x6a0] sm:$0xff]
    %v378 = vld [vmem:[#allocation5 + $0x6a8] sm:$0xff]
    %v379 = vld [vmem:[#allocation5 + $0x6b0] sm:$0xff]
    %v380 = vld [vmem:[#allocation5 + $0x6b8] sm:$0xff]
    %v381 = vld [vmem:[#allocation5 + $0x6c0] sm:$0xff]
    %v382 = vld [vmem:[#allocation5 + $0x6c8] sm:$0xff]
    %v383 = vld [vmem:[#allocation5 + $0x6d0] sm:$0xff]
    %v384 = vld [vmem:[#allocation5 + $0x6d8] sm:$0xff]
    %v385 = vld [vmem:[#allocation5 + $0x6e0] sm:$0xff]
    %v386 = vld [vmem:[#allocation5 + $0x6e8] sm:$0xff]
    %v387 = vld [vmem:[#allocation5 + $0x6f0] sm:$0xff]
    %v388 = vld [vmem:[#allocation5 + $0x6f8] sm:$0xff]
    %v389 = vld [vmem:[#allocation5 + $0x700] sm:$0xff]
    %v390 = vld [vmem:[#allocation5 + $0x708] sm:$0xff]
    %v391 = vld [vmem:[#allocation5 + $0x710] sm:$0xff]
    %v392 = vld [vmem:[#allocation5 + $0x718] sm:$0xff]
    %v393 = vld [vmem:[#allocation5 + $0x720] sm:$0xff]
    %v394 = vld [vmem:[#allocation5 + $0x728] sm:$0xff]
    %v395 = vld [vmem:[#allocation5 + $0x730] sm:$0xff]
    %v396 = vld [vmem:[#allocation5 + $0x738] sm:$0xff]
    %v397 = vld [vmem:[#allocation5 + $0x740] sm:$0xff]
    %v398 = vld [vmem:[#allocation5 + $0x748] sm:$0xff]
    %v399 = vld [vmem:[#allocation5 + $0x750] sm:$0xff]
    %v400 = vld [vmem:[#allocation5 + $0x758] sm:$0xff]
    %v401 = vld [vmem:[#allocation5 + $0x760] sm:$0xff]
    %v402 = vld [vmem:[#allocation5 + $0x768] sm:$0xff]
    %v403 = vld [vmem:[#allocation5 + $0x770] sm:$0xff]
    %v404 = vld [vmem:[#allocation5 + $0x778] sm:$0xff]
    %v405 = vld [vmem:[#allocation5 + $0x780] sm:$0xff]
    %v406 = vld [vmem:[#allocation5 + $0x788] sm:$0xff]
    %v407 = vld [vmem:[#allocation5 + $0x790] sm:$0xff]
    %v408 = vld [vmem:[#allocation5 + $0x798] sm:$0xff]
    %v409 = vld [vmem:[#allocation5 + $0x7a0] sm:$0xff]
    %v410 = vld [vmem:[#allocation5 + $0x7a8] sm:$0xff]
    %v411 = vld [vmem:[#allocation5 + $0x7b0] sm:$0xff]
    %v412 = vld [vmem:[#allocation5 + $0x7b8] sm:$0xff]
    %v413 = vld [vmem:[#allocation5 + $0x7c0] sm:$0xff]
    %v414 = vld [vmem:[#allocation5 + $0x7c8] sm:$0xff]
    %v415 = vld [vmem:[#allocation5 + $0x7d0] sm:$0xff]
    %v416 = vld [vmem:[#allocation5 + $0x7d8] sm:$0xff]
    %v417 = vld [vmem:[#allocation5 + $0x7e0] sm:$0xff]
    %v418 = vld [vmem:[#allocation5 + $0x7e8] sm:$0xff]
    %v419 = vld [vmem:[#allocation5 + $0x7f0] sm:$0xff]
    %v420 = vld [vmem:[#allocation5 + $0x7f8] sm:$0xff]
    %v421 = vld [vmem:[#allocation5 + $0x800] sm:$0xff]
    %v422 = vld [vmem:[#allocation5 + $0x808] sm:$0xff]
    %v423 = vld [vmem:[#allocation5 + $0x810] sm:$0xff]
    %v424 = vld [vmem:[#allocation5 + $0x818] sm:$0xff]
    %v425 = vld [vmem:[#allocation5 + $0x820] sm:$0xff]
    %v426 = vld [vmem:[#allocation5 + $0x828] sm:$0xff]
    %v427 = vld [vmem:[#allocation5 + $0x830] sm:$0xff]
    %v428 = vld [vmem:[#allocation5 + $0x838] sm:$0xff]
    %v429 = vld [vmem:[#allocation5 + $0x840] sm:$0xff]
    %v430 = vld [vmem:[#allocation5 + $0x848] sm:$0xff]
    %v431 = vld [vmem:[#allocation5 + $0x850] sm:$0xff]
    %v432 = vld [vmem:[#allocation5 + $0x858] sm:$0xff]
    %v433 = vld [vmem:[#allocation5 + $0x860] sm:$0xff]
    %v434 = vld [vmem:[#allocation5 + $0x868] sm:$0xff]
    %v435 = vld [vmem:[#allocation5 + $0x870] sm:$0xff]
    %v436 = vld [vmem:[#allocation5 + $0x878] sm:$0xff]
    %v437 = vld [vmem:[#allocation5 + $0x880] sm:$0xff]
    %v438 = vld [vmem:[#allocation5 + $0x888] sm:$0xff]
    %v439 = vld [vmem:[#allocation5 + $0x890] sm:$0xff]
    %v440 = vld [vmem:[#allocation5 + $0x898] sm:$0xff]
    %v441 = vld [vmem:[#allocation5 + $0x8a0] sm:$0xff]
    %v442 = vld [vmem:[#allocation5 + $0x8a8] sm:$0xff]
    %v443 = vld [vmem:[#allocation5 + $0x8b0] sm:$0xff]
    %v444 = vld [vmem:[#allocation5 + $0x8b8] sm:$0xff]
    %v445 = vld [vmem:[#allocation5 + $0x8c0] sm:$0xff]
    %v446 = vld [vmem:[#allocation5 + $0x8c8] sm:$0xff]
    %v447 = vld [vmem:[#allocation5 + $0x8d0] sm:$0xff]
    %v448 = vld [vmem:[#allocation5 + $0x8d8] sm:$0xff]
    %v449 = vld [vmem:[#allocation5 + $0x8e0] sm:$0xff]
    %v450 = vld [vmem:[#allocation5 + $0x8e8] sm:$0xff]
    %v451 = vld [vmem:[#allocation5 + $0x8f0] sm:$0xff]
    %v452 = vld [vmem:[#allocation5 + $0x8f8] sm:$0xff]
    %v453 = vld [vmem:[#allocation7] sm:$0x3f]
    %v455 = vlaneseq
    %v456 = vshrl.u32 %v455, 7
    %v457 = vsub.s32 0, %v456
    %v458 = vrot.slane %v453, %v457
    %v459 = vlaneseq
    %v460 = vshrl.u32 %v459, 7
    %v461 = vsub.s32 1, %v460
    %v462 = vrot.slane %v453, %v461
    %v463 = vlaneseq
    %v464 = vshrl.u32 %v463, 7
    %v465 = vsub.s32 2, %v464
    %v466 = vrot.slane %v453, %v465
    %v467 = vlaneseq
    %v468 = vshrl.u32 %v467, 7
    %v469 = vsub.s32 3, %v468
    %v470 = vrot.slane %v453, %v469
    %v471 = vlaneseq
    %v472 = vshrl.u32 %v471, 7
    %v473 = vsub.s32 4, %v472
    %v474 = vrot.slane %v453, %v473
    %v475 = vlaneseq
    %v476 = vshrl.u32 %v475, 7
    %v477 = vsub.s32 5, %v476
    %v478 = vrot.slane %v453, %v477
    %v497 = vunpack.c.l.b16 %v153
    %v498 = vunpack.c.l.b16 %v154
    %v499 = vunpack.c.l.b16 %v155
    %v500 = vunpack.c.l.b16 %v156
    %v501 = vunpack.c.l.b16 %v157
    %v502 = vunpack.c.l.b16 %v158
    %v503 = vunpack.c.l.b16 %v159
    %v504 = vunpack.c.l.b16 %v160
    %v505 = vunpack.c.l.b16 %v161
    %v506 = vunpack.c.l.b16 %v162
    %v507 = vunpack.c.l.b16 %v163
    %v508 = vunpack.c.l.b16 %v164
    %v509 = vrot.slane %v503, 7
    %vm510 = vcmask 1041409
    %v511 = vsel %vm510, %v509, %v497
    %v512 = vrot.slane %v504, 7
    %v513 = vsel %vm510, %v512, %v498
    %v514 = vrot.slane %v505, 7
    %v515 = vsel %vm510, %v514, %v499
    %v516 = vrot.slane %v506, 7
    %v517 = vsel %vm510, %v516, %v500
    %v518 = vrot.slane %v507, 7
    %v519 = vsel %vm510, %v518, %v501
    %v520 = vrot.slane %v508, 7
    %v521 = vsel %vm510, %v520, %v502
    %v522 = vpack.c.b16 %v511, %v511
    %v523 = vpack.c.b16 %v513, %v513
    %v524 = vpack.c.b16 %v515, %v515
    %v525 = vpack.c.b16 %v517, %v517
    %v526 = vpack.c.b16 %v519, %v519
    %v527 = vpack.c.b16 %v521, %v521
    %v822 = vunpack.c.l.b16 %v165
    %v823 = vunpack.c.h.b16 %v165
    %v824 = vunpack.c.l.b16 %v166
    %v825 = vunpack.c.h.b16 %v166
    %v826 = vunpack.c.l.b16 %v167
    %v827 = vunpack.c.h.b16 %v167
    %v828 = vunpack.c.l.b16 %v168
    %v829 = vunpack.c.h.b16 %v168
    %v830 = vunpack.c.l.b16 %v169
    %v831 = vunpack.c.h.b16 %v169
    %v832 = vunpack.c.l.b16 %v170
    %v833 = vunpack.c.h.b16 %v170
    %v834 = vunpack.c.l.b16 %v171
    %v835 = vunpack.c.h.b16 %v171
    %v836 = vunpack.c.l.b16 %v172
    %v837 = vunpack.c.h.b16 %v172
    %v838 = vunpack.c.l.b16 %v173
    %v839 = vunpack.c.h.b16 %v173
    %v840 = vunpack.c.l.b16 %v174
    %v841 = vunpack.c.h.b16 %v174
    %v842 = vunpack.c.l.b16 %v175
    %v843 = vunpack.c.h.b16 %v175
    %v844 = vunpack.c.l.b16 %v176
    %v845 = vunpack.c.h.b16 %v176
    %v846 = vunpack.c.l.b16 %v177
    %v847 = vunpack.c.h.b16 %v177
    %v848 = vunpack.c.l.b16 %v178
    %v849 = vunpack.c.h.b16 %v178
    %v850 = vunpack.c.l.b16 %v179
    %v851 = vunpack.c.h.b16 %v179
    %v852 = vunpack.c.l.b16 %v180
    %v853 = vunpack.c.h.b16 %v180
    %v854 = vunpack.c.l.b16 %v181
    %v855 = vunpack.c.h.b16 %v181
    %v856 = vunpack.c.l.b16 %v182
    %v857 = vunpack.c.h.b16 %v182
    %v858 = vunpack.c.l.b16 %v183
    %v859 = vunpack.c.h.b16 %v183
    %v860 = vunpack.c.l.b16 %v184
    %v861 = vunpack.c.h.b16 %v184
    %v862 = vunpack.c.l.b16 %v185
    %v863 = vunpack.c.h.b16 %v185
    %v864 = vunpack.c.l.b16 %v186
    %v865 = vunpack.c.h.b16 %v186
    %v866 = vunpack.c.l.b16 %v187
    %v867 = vunpack.c.h.b16 %v187
    %v868 = vunpack.c.l.b16 %v188
    %v869 = vunpack.c.h.b16 %v188
    %v870 = vunpack.c.l.b16 %v189
    %v871 = vunpack.c.h.b16 %v189
    %v872 = vunpack.c.l.b16 %v190
    %v873 = vunpack.c.h.b16 %v190
    %v874 = vunpack.c.l.b16 %v191
    %v875 = vunpack.c.h.b16 %v191
    %v876 = vunpack.c.l.b16 %v192
    %v877 = vunpack.c.h.b16 %v192
    %v878 = vunpack.c.l.b16 %v193
    %v879 = vunpack.c.h.b16 %v193
    %v880 = vunpack.c.l.b16 %v194
    %v881 = vunpack.c.h.b16 %v194
    %v882 = vunpack.c.l.b16 %v195
    %v883 = vunpack.c.h.b16 %v195
    %v884 = vunpack.c.l.b16 %v196
    %v885 = vunpack.c.h.b16 %v196
    %v886 = vunpack.c.l.b16 %v197
    %v887 = vunpack.c.h.b16 %v197
    %v888 = vunpack.c.l.b16 %v198
    %v889 = vunpack.c.h.b16 %v198
    %v890 = vunpack.c.l.b16 %v199
    %v891 = vunpack.c.h.b16 %v199
    %v892 = vunpack.c.l.b16 %v200
    %v893 = vunpack.c.h.b16 %v200
    %v894 = vunpack.c.l.b16 %v201
    %v895 = vunpack.c.h.b16 %v201
    %v896 = vunpack.c.l.b16 %v202
    %v897 = vunpack.c.h.b16 %v202
    %v898 = vunpack.c.l.b16 %v203
    %v899 = vunpack.c.h.b16 %v203
    %v900 = vunpack.c.l.b16 %v204
    %v901 = vunpack.c.h.b16 %v204
    %v902 = vunpack.c.l.b16 %v205
    %v903 = vunpack.c.h.b16 %v205
    %v904 = vunpack.c.l.b16 %v206
    %v905 = vunpack.c.h.b16 %v206
    %v906 = vunpack.c.l.b16 %v207
    %v907 = vunpack.c.h.b16 %v207
    %v908 = vunpack.c.l.b16 %v208
    %v909 = vunpack.c.h.b16 %v208
    %v910 = vunpack.c.l.b16 %v209
    %v911 = vunpack.c.h.b16 %v209
    %v912 = vunpack.c.l.b16 %v210
    %v913 = vunpack.c.h.b16 %v210
    %v914 = vunpack.c.l.b16 %v211
    %v915 = vunpack.c.h.b16 %v211
    %v916 = vunpack.c.l.b16 %v212
    %v917 = vunpack.c.h.b16 %v212
    %v918 = vunpack.c.l.b16 %v213
    %v919 = vunpack.c.h.b16 %v213
    %v920 = vunpack.c.l.b16 %v214
    %v921 = vunpack.c.h.b16 %v214
    %v922 = vunpack.c.l.b16 %v215
    %v923 = vunpack.c.h.b16 %v215
    %v924 = vunpack.c.l.b16 %v216
    %v925 = vunpack.c.h.b16 %v216
    %v926 = vunpack.c.l.b16 %v217
    %v927 = vunpack.c.h.b16 %v217
    %v928 = vunpack.c.l.b16 %v218
    %v929 = vunpack.c.h.b16 %v218
    %v930 = vunpack.c.l.b16 %v219
    %v931 = vunpack.c.h.b16 %v219
    %v932 = vunpack.c.l.b16 %v220
    %v933 = vunpack.c.h.b16 %v220
    %v934 = vunpack.c.l.b16 %v221
    %v935 = vunpack.c.h.b16 %v221
    %v936 = vunpack.c.l.b16 %v222
    %v937 = vunpack.c.h.b16 %v222
    %v938 = vunpack.c.l.b16 %v223
    %v939 = vunpack.c.h.b16 %v223
    %v940 = vunpack.c.l.b16 %v224
    %v941 = vunpack.c.h.b16 %v224
    %v942 = vunpack.c.l.b16 %v225
    %v943 = vunpack.c.h.b16 %v225
    %v944 = vunpack.c.l.b16 %v226
    %v945 = vunpack.c.h.b16 %v226
    %v946 = vunpack.c.l.b16 %v227
    %v947 = vunpack.c.h.b16 %v227
    %v948 = vunpack.c.l.b16 %v228
    %v949 = vunpack.c.h.b16 %v228
    %v950 = vunpack.c.l.b16 %v229
    %v951 = vunpack.c.h.b16 %v229
    %v952 = vunpack.c.l.b16 %v230
    %v953 = vunpack.c.h.b16 %v230
    %v954 = vunpack.c.l.b16 %v231
    %v955 = vunpack.c.h.b16 %v231
    %v956 = vunpack.c.l.b16 %v232
    %v957 = vunpack.c.h.b16 %v232
    %v958 = vunpack.c.l.b16 %v233
    %v959 = vunpack.c.h.b16 %v233
    %v960 = vunpack.c.l.b16 %v234
    %v961 = vunpack.c.h.b16 %v234
    %v962 = vunpack.c.l.b16 %v235
    %v963 = vunpack.c.h.b16 %v235
    %v964 = vunpack.c.l.b16 %v236
    %v965 = vunpack.c.h.b16 %v236
    %v966 = vunpack.c.l.b16 %v237
    %v967 = vunpack.c.h.b16 %v237
    %v968 = vunpack.c.l.b16 %v238
    %v969 = vunpack.c.h.b16 %v238
    %v970 = vunpack.c.l.b16 %v239
    %v971 = vunpack.c.h.b16 %v239
    %v972 = vunpack.c.l.b16 %v240
    %v973 = vunpack.c.h.b16 %v240
    %v974 = vunpack.c.l.b16 %v241
    %v975 = vunpack.c.h.b16 %v241
    %v976 = vunpack.c.l.b16 %v242
    %v977 = vunpack.c.h.b16 %v242
    %v978 = vunpack.c.l.b16 %v243
    %v979 = vunpack.c.h.b16 %v243
    %v980 = vunpack.c.l.b16 %v244
    %v981 = vunpack.c.h.b16 %v244
    %v982 = vunpack.c.l.b16 %v245
    %v983 = vunpack.c.h.b16 %v245
    %v984 = vunpack.c.l.b16 %v246
    %v985 = vunpack.c.h.b16 %v246
    %v986 = vunpack.c.l.b16 %v247
    %v987 = vunpack.c.h.b16 %v247
    %v988 = vunpack.c.l.b16 %v248
    %v989 = vunpack.c.h.b16 %v248
    %v990 = vunpack.c.l.b16 %v249
    %v991 = vunpack.c.h.b16 %v249
    %v992 = vunpack.c.l.b16 %v250
    %v993 = vunpack.c.h.b16 %v250
    %v994 = vunpack.c.l.b16 %v251
    %v995 = vunpack.c.h.b16 %v251
    %v996 = vunpack.c.l.b16 %v252
    %v997 = vunpack.c.h.b16 %v252
    %v998 = vunpack.c.l.b16 %v253
    %v999 = vunpack.c.h.b16 %v253
    %v1000 = vunpack.c.l.b16 %v254
    %v1001 = vunpack.c.h.b16 %v254
    %v1002 = vunpack.c.l.b16 %v255
    %v1003 = vunpack.c.h.b16 %v255
    %v1004 = vunpack.c.l.b16 %v256
    %v1005 = vunpack.c.h.b16 %v256
    %v1006 = vunpack.c.l.b16 %v257
    %v1007 = vunpack.c.h.b16 %v257
    %v1008 = vunpack.c.l.b16 %v258
    %v1009 = vunpack.c.h.b16 %v258
    %v1010 = vunpack.c.l.b16 %v259
    %v1011 = vunpack.c.h.b16 %v259
    %v1012 = vunpack.c.l.b16 %v260
    %v1013 = vunpack.c.h.b16 %v260
    %v1014 = vunpack.c.l.b16 %v261
    %v1015 = vunpack.c.h.b16 %v261
    %v1016 = vunpack.c.l.b16 %v262
    %v1017 = vunpack.c.h.b16 %v262
    %v1018 = vunpack.c.l.b16 %v263
    %v1019 = vunpack.c.h.b16 %v263
    %v1020 = vunpack.c.l.b16 %v264
    %v1021 = vunpack.c.h.b16 %v264
    %v1022 = vunpack.c.l.b16 %v265
    %v1023 = vunpack.c.h.b16 %v265
    %v1024 = vunpack.c.l.b16 %v266
    %v1025 = vunpack.c.h.b16 %v266
    %v1026 = vunpack.c.l.b16 %v267
    %v1027 = vunpack.c.h.b16 %v267
    %v1028 = vunpack.c.l.b16 %v268
    %v1029 = vunpack.c.h.b16 %v268
    %v1030 = vunpack.c.l.b16 %v269
    %v1031 = vunpack.c.h.b16 %v269
    %v1032 = vunpack.c.l.b16 %v270
    %v1033 = vunpack.c.h.b16 %v270
    %v1034 = vunpack.c.l.b16 %v271
    %v1035 = vunpack.c.h.b16 %v271
    %v1036 = vunpack.c.l.b16 %v272
    %v1037 = vunpack.c.h.b16 %v272
    %v1038 = vunpack.c.l.b16 %v273
    %v1039 = vunpack.c.h.b16 %v273
    %v1040 = vunpack.c.l.b16 %v274
    %v1041 = vunpack.c.h.b16 %v274
    %v1042 = vunpack.c.l.b16 %v275
    %v1043 = vunpack.c.h.b16 %v275
    %v1044 = vunpack.c.l.b16 %v276
    %v1045 = vunpack.c.h.b16 %v276
    %v1046 = vunpack.c.l.b16 %v277
    %v1047 = vunpack.c.h.b16 %v277
    %v1048 = vunpack.c.l.b16 %v278
    %v1049 = vunpack.c.h.b16 %v278
    %v1050 = vunpack.c.l.b16 %v279
    %v1051 = vunpack.c.h.b16 %v279
    %v1052 = vunpack.c.l.b16 %v280
    %v1053 = vunpack.c.h.b16 %v280
    %v1054 = vunpack.c.l.b16 %v281
    %v1055 = vunpack.c.h.b16 %v281
    %v1056 = vunpack.c.l.b16 %v282
    %v1057 = vunpack.c.h.b16 %v282
    %v1058 = vunpack.c.l.b16 %v283
    %v1059 = vunpack.c.h.b16 %v283
    %v1060 = vunpack.c.l.b16 %v284
    %v1061 = vunpack.c.h.b16 %v284
    %v1062 = vunpack.c.l.b16 %v285
    %v1063 = vunpack.c.h.b16 %v285
    %v1064 = vunpack.c.l.b16 %v286
    %v1065 = vunpack.c.h.b16 %v286
    %v1066 = vunpack.c.l.b16 %v287
    %v1067 = vunpack.c.h.b16 %v287
    %v1068 = vunpack.c.l.b16 %v288
    %v1069 = vunpack.c.h.b16 %v288
    %v1070 = vunpack.c.l.b16 %v289
    %v1071 = vunpack.c.h.b16 %v289
    %v1072 = vunpack.c.l.b16 %v290
    %v1073 = vunpack.c.h.b16 %v290
    %v1074 = vunpack.c.l.b16 %v291
    %v1075 = vunpack.c.h.b16 %v291
    %v1076 = vunpack.c.l.b16 %v292
    %v1077 = vunpack.c.h.b16 %v292
    %v1078 = vunpack.c.l.b16 %v293
    %v1079 = vunpack.c.h.b16 %v293
    %v1080 = vunpack.c.l.b16 %v294
    %v1081 = vunpack.c.h.b16 %v294
    %v1082 = vunpack.c.l.b16 %v295
    %v1083 = vunpack.c.h.b16 %v295
    %v1084 = vunpack.c.l.b16 %v296
    %v1085 = vunpack.c.h.b16 %v296
    %v1086 = vunpack.c.l.b16 %v297
    %v1087 = vunpack.c.h.b16 %v297
    %v1088 = vunpack.c.l.b16 %v298
    %v1089 = vunpack.c.h.b16 %v298
    %v1090 = vunpack.c.l.b16 %v299
    %v1091 = vunpack.c.h.b16 %v299
    %v1092 = vunpack.c.l.b16 %v300
    %v1093 = vunpack.c.h.b16 %v300
    %v1094 = vunpack.c.l.b16 %v301
    %v1095 = vunpack.c.h.b16 %v301
    %v1096 = vunpack.c.l.b16 %v302
    %v1097 = vunpack.c.h.b16 %v302
    %v1098 = vunpack.c.l.b16 %v303
    %v1099 = vunpack.c.h.b16 %v303
    %v1100 = vunpack.c.l.b16 %v304
    %v1101 = vunpack.c.h.b16 %v304
    %v1102 = vunpack.c.l.b16 %v305
    %v1103 = vunpack.c.h.b16 %v305
    %v1104 = vunpack.c.l.b16 %v306
    %v1105 = vunpack.c.h.b16 %v306
    %v1106 = vunpack.c.l.b16 %v307
    %v1107 = vunpack.c.h.b16 %v307
    %v1108 = vunpack.c.l.b16 %v308
    %v1109 = vunpack.c.h.b16 %v308
    %v1110 = vunpack.c.l.b16 %v309
    %v1111 = vunpack.c.h.b16 %v309
    %v1112 = vunpack.c.l.b16 %v310
    %v1113 = vunpack.c.h.b16 %v310
    %v1114 = vunpack.c.l.b16 %v311
    %v1115 = vunpack.c.h.b16 %v311
    %v1116 = vunpack.c.l.b16 %v312
    %v1117 = vunpack.c.h.b16 %v312
    %v1118 = vunpack.c.l.b16 %v313
    %v1119 = vunpack.c.h.b16 %v313
    %v1120 = vunpack.c.l.b16 %v314
    %v1121 = vunpack.c.h.b16 %v314
    %v1122 = vunpack.c.l.b16 %v315
    %v1123 = vunpack.c.h.b16 %v315
    %v1124 = vunpack.c.l.b16 %v316
    %v1125 = vunpack.c.h.b16 %v316
    %v1126 = vunpack.c.l.b16 %v317
    %v1127 = vunpack.c.h.b16 %v317
    %v1128 = vunpack.c.l.b16 %v318
    %v1129 = vunpack.c.h.b16 %v318
    %v1130 = vunpack.c.l.b16 %v319
    %v1131 = vunpack.c.h.b16 %v319
    %v1132 = vunpack.c.l.b16 %v320
    %v1133 = vunpack.c.h.b16 %v320
    %v1134 = vunpack.c.l.b16 %v321
    %v1135 = vunpack.c.h.b16 %v321
    %v1136 = vunpack.c.l.b16 %v322
    %v1137 = vunpack.c.h.b16 %v322
    %v1138 = vunpack.c.l.b16 %v323
    %v1139 = vunpack.c.h.b16 %v323
    %v1140 = vunpack.c.l.b16 %v324
    %v1141 = vunpack.c.h.b16 %v324
    %v1142 = vunpack.c.l.b16 %v325
    %v1143 = vunpack.c.h.b16 %v325
    %v1144 = vunpack.c.l.b16 %v326
    %v1145 = vunpack.c.h.b16 %v326
    %v1146 = vunpack.c.l.b16 %v327
    %v1147 = vunpack.c.h.b16 %v327
    %v1148 = vunpack.c.l.b16 %v328
    %v1149 = vunpack.c.h.b16 %v328
    %v1150 = vunpack.c.l.b16 %v329
    %v1151 = vunpack.c.h.b16 %v329
    %v1152 = vunpack.c.l.b16 %v330
    %v1153 = vunpack.c.h.b16 %v330
    %v1154 = vunpack.c.l.b16 %v331
    %v1155 = vunpack.c.h.b16 %v331
    %v1156 = vunpack.c.l.b16 %v332
    %v1157 = vunpack.c.h.b16 %v332
    %v1158 = vunpack.c.l.b16 %v333
    %v1159 = vunpack.c.h.b16 %v333
    %v1160 = vunpack.c.l.b16 %v334
    %v1161 = vunpack.c.h.b16 %v334
    %v1162 = vunpack.c.l.b16 %v335
    %v1163 = vunpack.c.h.b16 %v335
    %v1164 = vunpack.c.l.b16 %v336
    %v1165 = vunpack.c.h.b16 %v336
    %v1166 = vunpack.c.l.b16 %v337
    %v1167 = vunpack.c.h.b16 %v337
    %v1168 = vunpack.c.l.b16 %v338
    %v1169 = vunpack.c.h.b16 %v338
    %v1170 = vunpack.c.l.b16 %v339
    %v1171 = vunpack.c.h.b16 %v339
    %v1172 = vunpack.c.l.b16 %v340
    %v1173 = vunpack.c.h.b16 %v340
    %v1174 = vunpack.c.l.b16 %v341
    %v1175 = vunpack.c.h.b16 %v341
    %v1176 = vunpack.c.l.b16 %v342
    %v1177 = vunpack.c.h.b16 %v342
    %v1178 = vunpack.c.l.b16 %v343
    %v1179 = vunpack.c.h.b16 %v343
    %v1180 = vunpack.c.l.b16 %v344
    %v1181 = vunpack.c.h.b16 %v344
    %v1182 = vunpack.c.l.b16 %v345
    %v1183 = vunpack.c.h.b16 %v345
    %v1184 = vunpack.c.l.b16 %v346
    %v1185 = vunpack.c.h.b16 %v346
    %v1186 = vunpack.c.l.b16 %v347
    %v1187 = vunpack.c.h.b16 %v347
    %v1188 = vunpack.c.l.b16 %v348
    %v1189 = vunpack.c.h.b16 %v348
    %v1190 = vunpack.c.l.b16 %v349
    %v1191 = vunpack.c.h.b16 %v349
    %v1192 = vunpack.c.l.b16 %v350
    %v1193 = vunpack.c.h.b16 %v350
    %v1194 = vunpack.c.l.b16 %v351
    %v1195 = vunpack.c.h.b16 %v351
    %v1196 = vunpack.c.l.b16 %v352
    %v1197 = vunpack.c.h.b16 %v352
    %v1198 = vunpack.c.l.b16 %v353
    %v1199 = vunpack.c.h.b16 %v353
    %v1200 = vunpack.c.l.b16 %v354
    %v1201 = vunpack.c.h.b16 %v354
    %v1202 = vunpack.c.l.b16 %v355
    %v1203 = vunpack.c.h.b16 %v355
    %v1204 = vunpack.c.l.b16 %v356
    %v1205 = vunpack.c.h.b16 %v356
    %v1206 = vunpack.c.l.b16 %v357
    %v1207 = vunpack.c.h.b16 %v357
    %v1208 = vunpack.c.l.b16 %v358
    %v1209 = vunpack.c.h.b16 %v358
    %v1210 = vunpack.c.l.b16 %v359
    %v1211 = vunpack.c.h.b16 %v359
    %v1212 = vunpack.c.l.b16 %v360
    %v1213 = vunpack.c.h.b16 %v360
    %v1214 = vunpack.c.l.b16 %v361
    %v1215 = vunpack.c.h.b16 %v361
    %v1216 = vunpack.c.l.b16 %v362
    %v1217 = vunpack.c.h.b16 %v362
    %v1218 = vunpack.c.l.b16 %v363
    %v1219 = vunpack.c.h.b16 %v363
    %v1220 = vunpack.c.l.b16 %v364
    %v1221 = vunpack.c.h.b16 %v364
    %v1222 = vunpack.c.l.b16 %v365
    %v1223 = vunpack.c.h.b16 %v365
    %v1224 = vunpack.c.l.b16 %v366
    %v1225 = vunpack.c.h.b16 %v366
    %v1226 = vunpack.c.l.b16 %v367
    %v1227 = vunpack.c.h.b16 %v367
    %v1228 = vunpack.c.l.b16 %v368
    %v1229 = vunpack.c.h.b16 %v368
    %v1230 = vunpack.c.l.b16 %v369
    %v1231 = vunpack.c.h.b16 %v369
    %v1232 = vunpack.c.l.b16 %v370
    %v1233 = vunpack.c.h.b16 %v370
    %v1234 = vunpack.c.l.b16 %v371
    %v1235 = vunpack.c.h.b16 %v371
    %v1236 = vunpack.c.l.b16 %v372
    %v1237 = vunpack.c.h.b16 %v372
    %v1238 = vunpack.c.l.b16 %v373
    %v1239 = vunpack.c.h.b16 %v373
    %v1240 = vunpack.c.l.b16 %v374
    %v1241 = vunpack.c.h.b16 %v374
    %v1242 = vunpack.c.l.b16 %v375
    %v1243 = vunpack.c.h.b16 %v375
    %v1244 = vunpack.c.l.b16 %v376
    %v1245 = vunpack.c.h.b16 %v376
    %v1246 = vunpack.c.l.b16 %v377
    %v1247 = vunpack.c.h.b16 %v377
    %v1248 = vunpack.c.l.b16 %v378
    %v1249 = vunpack.c.h.b16 %v378
    %v1250 = vunpack.c.l.b16 %v379
    %v1251 = vunpack.c.h.b16 %v379
    %v1252 = vunpack.c.l.b16 %v380
    %v1253 = vunpack.c.h.b16 %v380
    %v1254 = vunpack.c.l.b16 %v381
    %v1255 = vunpack.c.h.b16 %v381
    %v1256 = vunpack.c.l.b16 %v382
    %v1257 = vunpack.c.h.b16 %v382
    %v1258 = vunpack.c.l.b16 %v383
    %v1259 = vunpack.c.h.b16 %v383
    %v1260 = vunpack.c.l.b16 %v384
    %v1261 = vunpack.c.h.b16 %v384
    %v1262 = vunpack.c.l.b16 %v385
    %v1263 = vunpack.c.h.b16 %v385
    %v1264 = vunpack.c.l.b16 %v386
    %v1265 = vunpack.c.h.b16 %v386
    %v1266 = vunpack.c.l.b16 %v387
    %v1267 = vunpack.c.h.b16 %v387
    %v1268 = vunpack.c.l.b16 %v388
    %v1269 = vunpack.c.h.b16 %v388
    %v1270 = vunpack.c.l.b16 %v389
    %v1271 = vunpack.c.h.b16 %v389
    %v1272 = vunpack.c.l.b16 %v390
    %v1273 = vunpack.c.h.b16 %v390
    %v1274 = vunpack.c.l.b16 %v391
    %v1275 = vunpack.c.h.b16 %v391
    %v1276 = vunpack.c.l.b16 %v392
    %v1277 = vunpack.c.h.b16 %v392
    %v1278 = vunpack.c.l.b16 %v393
    %v1279 = vunpack.c.h.b16 %v393
    %v1280 = vunpack.c.l.b16 %v394
    %v1281 = vunpack.c.h.b16 %v394
    %v1282 = vunpack.c.l.b16 %v395
    %v1283 = vunpack.c.h.b16 %v395
    %v1284 = vunpack.c.l.b16 %v396
    %v1285 = vunpack.c.h.b16 %v396
    %v1286 = vunpack.c.l.b16 %v397
    %v1287 = vunpack.c.h.b16 %v397
    %v1288 = vunpack.c.l.b16 %v398
    %v1289 = vunpack.c.h.b16 %v398
    %v1290 = vunpack.c.l.b16 %v399
    %v1291 = vunpack.c.h.b16 %v399
    %v1292 = vunpack.c.l.b16 %v400
    %v1293 = vunpack.c.h.b16 %v400
    %v1294 = vunpack.c.l.b16 %v401
    %v1295 = vunpack.c.h.b16 %v401
    %v1296 = vunpack.c.l.b16 %v402
    %v1297 = vunpack.c.h.b16 %v402
    %v1298 = vunpack.c.l.b16 %v403
    %v1299 = vunpack.c.h.b16 %v403
    %v1300 = vunpack.c.l.b16 %v404
    %v1301 = vunpack.c.h.b16 %v404
    %v1302 = vunpack.c.l.b16 %v405
    %v1303 = vunpack.c.h.b16 %v405
    %v1304 = vunpack.c.l.b16 %v406
    %v1305 = vunpack.c.h.b16 %v406
    %v1306 = vunpack.c.l.b16 %v407
    %v1307 = vunpack.c.h.b16 %v407
    %v1308 = vunpack.c.l.b16 %v408
    %v1309 = vunpack.c.h.b16 %v408
    %v1310 = vunpack.c.l.b16 %v409
    %v1311 = vunpack.c.h.b16 %v409
    %v1312 = vunpack.c.l.b16 %v410
    %v1313 = vunpack.c.h.b16 %v410
    %v1314 = vunpack.c.l.b16 %v411
    %v1315 = vunpack.c.h.b16 %v411
    %v1316 = vunpack.c.l.b16 %v412
    %v1317 = vunpack.c.h.b16 %v412
    %v1318 = vunpack.c.l.b16 %v413
    %v1319 = vunpack.c.h.b16 %v413
    %v1320 = vunpack.c.l.b16 %v414
    %v1321 = vunpack.c.h.b16 %v414
    %v1322 = vunpack.c.l.b16 %v415
    %v1323 = vunpack.c.h.b16 %v415
    %v1324 = vunpack.c.l.b16 %v416
    %v1325 = vunpack.c.h.b16 %v416
    %v1326 = vunpack.c.l.b16 %v417
    %v1327 = vunpack.c.h.b16 %v417
    %v1328 = vunpack.c.l.b16 %v418
    %v1329 = vunpack.c.h.b16 %v418
    %v1330 = vunpack.c.l.b16 %v419
    %v1331 = vunpack.c.h.b16 %v419
    %v1332 = vunpack.c.l.b16 %v420
    %v1333 = vunpack.c.h.b16 %v420
    %v1334 = vunpack.c.l.b16 %v421
    %v1335 = vunpack.c.h.b16 %v421
    %v1336 = vunpack.c.l.b16 %v422
    %v1337 = vunpack.c.h.b16 %v422
    %v1338 = vunpack.c.l.b16 %v423
    %v1339 = vunpack.c.h.b16 %v423
    %v1340 = vunpack.c.l.b16 %v424
    %v1341 = vunpack.c.h.b16 %v424
    %v1342 = vunpack.c.l.b16 %v425
    %v1343 = vunpack.c.h.b16 %v425
    %v1344 = vunpack.c.l.b16 %v426
    %v1345 = vunpack.c.h.b16 %v426
    %v1346 = vunpack.c.l.b16 %v427
    %v1347 = vunpack.c.h.b16 %v427
    %v1348 = vunpack.c.l.b16 %v428
    %v1349 = vunpack.c.h.b16 %v428
    %v1350 = vunpack.c.l.b16 %v429
    %v1351 = vunpack.c.h.b16 %v429
    %v1352 = vunpack.c.l.b16 %v430
    %v1353 = vunpack.c.h.b16 %v430
    %v1354 = vunpack.c.l.b16 %v431
    %v1355 = vunpack.c.h.b16 %v431
    %v1356 = vunpack.c.l.b16 %v432
    %v1357 = vunpack.c.h.b16 %v432
    %v1358 = vunpack.c.l.b16 %v433
    %v1359 = vunpack.c.h.b16 %v433
    %v1360 = vunpack.c.l.b16 %v434
    %v1361 = vunpack.c.h.b16 %v434
    %v1362 = vunpack.c.l.b16 %v435
    %v1363 = vunpack.c.h.b16 %v435
    %v1364 = vunpack.c.l.b16 %v436
    %v1365 = vunpack.c.h.b16 %v436
    %v1366 = vunpack.c.l.b16 %v437
    %v1367 = vunpack.c.h.b16 %v437
    %v1368 = vunpack.c.l.b16 %v438
    %v1369 = vunpack.c.h.b16 %v438
    %v1370 = vunpack.c.l.b16 %v439
    %v1371 = vunpack.c.h.b16 %v439
    %v1372 = vunpack.c.l.b16 %v440
    %v1373 = vunpack.c.h.b16 %v440
    %v1374 = vunpack.c.l.b16 %v441
    %v1375 = vunpack.c.h.b16 %v441
    %v1376 = vunpack.c.l.b16 %v442
    %v1377 = vunpack.c.h.b16 %v442
    %v1378 = vunpack.c.l.b16 %v443
    %v1379 = vunpack.c.h.b16 %v443
    %v1380 = vunpack.c.l.b16 %v444
    %v1381 = vunpack.c.h.b16 %v444
    %v1382 = vunpack.c.l.b16 %v445
    %v1383 = vunpack.c.h.b16 %v445
    %v1384 = vunpack.c.l.b16 %v446
    %v1385 = vunpack.c.h.b16 %v446
    %v1386 = vunpack.c.l.b16 %v447
    %v1387 = vunpack.c.h.b16 %v447
    %v1388 = vunpack.c.l.b16 %v448
    %v1389 = vunpack.c.h.b16 %v448
    %v1390 = vunpack.c.l.b16 %v449
    %v1391 = vunpack.c.h.b16 %v449
    %v1392 = vunpack.c.l.b16 %v450
    %v1393 = vunpack.c.h.b16 %v450
    %v1394 = vunpack.c.l.b16 %v451
    %v1395 = vunpack.c.h.b16 %v451
    %v1396 = vunpack.c.l.b16 %v452
    %v1397 = vunpack.c.h.b16 %v452
    %v1398 = vpack.c.b16 %v828, %v822
    %v1399 = vpack.c.b16 %v829, %v823
    %v1400 = vpack.c.b16 %v830, %v824
    %v1401 = vpack.c.b16 %v831, %v825
    %v1402 = vpack.c.b16 %v832, %v826
    %v1403 = vpack.c.b16 %v833, %v827
    %v1404 = vpack.c.b16 %v840, %v834
    %v1405 = vpack.c.b16 %v841, %v835
    %v1406 = vpack.c.b16 %v842, %v836
    %v1407 = vpack.c.b16 %v843, %v837
    %v1408 = vpack.c.b16 %v844, %v838
    %v1409 = vpack.c.b16 %v845, %v839
    %v1410 = vpack.c.b16 %v852, %v846
    %v1411 = vpack.c.b16 %v853, %v847
    %v1412 = vpack.c.b16 %v854, %v848
    %v1413 = vpack.c.b16 %v855, %v849
    %v1414 = vpack.c.b16 %v856, %v850
    %v1415 = vpack.c.b16 %v857, %v851
    %v1416 = vpack.c.b16 %v864, %v858
    %v1417 = vpack.c.b16 %v865, %v859
    %v1418 = vpack.c.b16 %v866, %v860
    %v1419 = vpack.c.b16 %v867, %v861
    %v1420 = vpack.c.b16 %v868, %v862
    %v1421 = vpack.c.b16 %v869, %v863
    %v1422 = vpack.c.b16 %v876, %v870
    %v1423 = vpack.c.b16 %v877, %v871
    %v1424 = vpack.c.b16 %v878, %v872
    %v1425 = vpack.c.b16 %v879, %v873
    %v1426 = vpack.c.b16 %v880, %v874
    %v1427 = vpack.c.b16 %v881, %v875
    %v1428 = vpack.c.b16 %v888, %v882
    %v1429 = vpack.c.b16 %v889, %v883
    %v1430 = vpack.c.b16 %v890, %v884
    %v1431 = vpack.c.b16 %v891, %v885
    %v1432 = vpack.c.b16 %v892, %v886
    %v1433 = vpack.c.b16 %v893, %v887
    %v1434 = vpack.c.b16 %v900, %v894
    %v1435 = vpack.c.b16 %v901, %v895
    %v1436 = vpack.c.b16 %v902, %v896
    %v1437 = vpack.c.b16 %v903, %v897
    %v1438 = vpack.c.b16 %v904, %v898
    %v1439 = vpack.c.b16 %v905, %v899
    %v1440 = vpack.c.b16 %v912, %v906
    %v1441 = vpack.c.b16 %v913, %v907
    %v1442 = vpack.c.b16 %v914, %v908
    %v1443 = vpack.c.b16 %v915, %v909
    %v1444 = vpack.c.b16 %v916, %v910
    %v1445 = vpack.c.b16 %v917, %v911
    %v1446 = vpack.c.b16 %v924, %v918
    %v1447 = vpack.c.b16 %v925, %v919
    %v1448 = vpack.c.b16 %v926, %v920
    %v1449 = vpack.c.b16 %v927, %v921
    %v1450 = vpack.c.b16 %v928, %v922
    %v1451 = vpack.c.b16 %v929, %v923
    %v1452 = vpack.c.b16 %v936, %v930
    %v1453 = vpack.c.b16 %v937, %v931
    %v1454 = vpack.c.b16 %v938, %v932
    %v1455 = vpack.c.b16 %v939, %v933
    %v1456 = vpack.c.b16 %v940, %v934
    %v1457 = vpack.c.b16 %v941, %v935
    %v1458 = vpack.c.b16 %v948, %v942
    %v1459 = vpack.c.b16 %v949, %v943
    %v1460 = vpack.c.b16 %v950, %v944
    %v1461 = vpack.c.b16 %v951, %v945
    %v1462 = vpack.c.b16 %v952, %v946
    %v1463 = vpack.c.b16 %v953, %v947
    %v1464 = vpack.c.b16 %v960, %v954
    %v1465 = vpack.c.b16 %v961, %v955
    %v1466 = vpack.c.b16 %v962, %v956
    %v1467 = vpack.c.b16 %v963, %v957
    %v1468 = vpack.c.b16 %v964, %v958
    %v1469 = vpack.c.b16 %v965, %v959
    %v1470 = vpack.c.b16 %v972, %v966
    %v1471 = vpack.c.b16 %v973, %v967
    %v1472 = vpack.c.b16 %v974, %v968
    %v1473 = vpack.c.b16 %v975, %v969
    %v1474 = vpack.c.b16 %v976, %v970
    %v1475 = vpack.c.b16 %v977, %v971
    %v1476 = vpack.c.b16 %v984, %v978
    %v1477 = vpack.c.b16 %v985, %v979
    %v1478 = vpack.c.b16 %v986, %v980
    %v1479 = vpack.c.b16 %v987, %v981
    %v1480 = vpack.c.b16 %v988, %v982
    %v1481 = vpack.c.b16 %v989, %v983
    %v1482 = vpack.c.b16 %v996, %v990
    %v1483 = vpack.c.b16 %v997, %v991
    %v1484 = vpack.c.b16 %v998, %v992
    %v1485 = vpack.c.b16 %v999, %v993
    %v1486 = vpack.c.b16 %v1000, %v994
    %v1487 = vpack.c.b16 %v1001, %v995
    %v1488 = vpack.c.b16 %v1008, %v1002
    %v1489 = vpack.c.b16 %v1009, %v1003
    %v1490 = vpack.c.b16 %v1010, %v1004
    %v1491 = vpack.c.b16 %v1011, %v1005
    %v1492 = vpack.c.b16 %v1012, %v1006
    %v1493 = vpack.c.b16 %v1013, %v1007
    %v1494 = vpack.c.b16 %v1020, %v1014
    %v1495 = vpack.c.b16 %v1021, %v1015
    %v1496 = vpack.c.b16 %v1022, %v1016
    %v1497 = vpack.c.b16 %v1023, %v1017
    %v1498 = vpack.c.b16 %v1024, %v1018
    %v1499 = vpack.c.b16 %v1025, %v1019
    %v1500 = vpack.c.b16 %v1032, %v1026
    %v1501 = vpack.c.b16 %v1033, %v1027
    %v1502 = vpack.c.b16 %v1034, %v1028
    %v1503 = vpack.c.b16 %v1035, %v1029
    %v1504 = vpack.c.b16 %v1036, %v1030
    %v1505 = vpack.c.b16 %v1037, %v1031
    %v1506 = vpack.c.b16 %v1044, %v1038
    %v1507 = vpack.c.b16 %v1045, %v1039
    %v1508 = vpack.c.b16 %v1046, %v1040
    %v1509 = vpack.c.b16 %v1047, %v1041
    %v1510 = vpack.c.b16 %v1048, %v1042
    %v1511 = vpack.c.b16 %v1049, %v1043
    %v1512 = vpack.c.b16 %v1056, %v1050
    %v1513 = vpack.c.b16 %v1057, %v1051
    %v1514 = vpack.c.b16 %v1058, %v1052
    %v1515 = vpack.c.b16 %v1059, %v1053
    %v1516 = vpack.c.b16 %v1060, %v1054
    %v1517 = vpack.c.b16 %v1061, %v1055
    %v1518 = vpack.c.b16 %v1068, %v1062
    %v1519 = vpack.c.b16 %v1069, %v1063
    %v1520 = vpack.c.b16 %v1070, %v1064
    %v1521 = vpack.c.b16 %v1071, %v1065
    %v1522 = vpack.c.b16 %v1072, %v1066
    %v1523 = vpack.c.b16 %v1073, %v1067
    %v1524 = vpack.c.b16 %v1080, %v1074
    %v1525 = vpack.c.b16 %v1081, %v1075
    %v1526 = vpack.c.b16 %v1082, %v1076
    %v1527 = vpack.c.b16 %v1083, %v1077
    %v1528 = vpack.c.b16 %v1084, %v1078
    %v1529 = vpack.c.b16 %v1085, %v1079
    %v1530 = vpack.c.b16 %v1092, %v1086
    %v1531 = vpack.c.b16 %v1093, %v1087
    %v1532 = vpack.c.b16 %v1094, %v1088
    %v1533 = vpack.c.b16 %v1095, %v1089
    %v1534 = vpack.c.b16 %v1096, %v1090
    %v1535 = vpack.c.b16 %v1097, %v1091
    %v1536 = vpack.c.b16 %v1104, %v1098
    %v1537 = vpack.c.b16 %v1105, %v1099
    %v1538 = vpack.c.b16 %v1106, %v1100
    %v1539 = vpack.c.b16 %v1107, %v1101
    %v1540 = vpack.c.b16 %v1108, %v1102
    %v1541 = vpack.c.b16 %v1109, %v1103
    %v1542 = vpack.c.b16 %v1116, %v1110
    %v1543 = vpack.c.b16 %v1117, %v1111
    %v1544 = vpack.c.b16 %v1118, %v1112
    %v1545 = vpack.c.b16 %v1119, %v1113
    %v1546 = vpack.c.b16 %v1120, %v1114
    %v1547 = vpack.c.b16 %v1121, %v1115
    %v1548 = vpack.c.b16 %v1128, %v1122
    %v1549 = vpack.c.b16 %v1129, %v1123
    %v1550 = vpack.c.b16 %v1130, %v1124
    %v1551 = vpack.c.b16 %v1131, %v1125
    %v1552 = vpack.c.b16 %v1132, %v1126
    %v1553 = vpack.c.b16 %v1133, %v1127
    %v1554 = vpack.c.b16 %v1140, %v1134
    %v1555 = vpack.c.b16 %v1141, %v1135
    %v1556 = vpack.c.b16 %v1142, %v1136
    %v1557 = vpack.c.b16 %v1143, %v1137
    %v1558 = vpack.c.b16 %v1144, %v1138
    %v1559 = vpack.c.b16 %v1145, %v1139
    %v1560 = vpack.c.b16 %v1152, %v1146
    %v1561 = vpack.c.b16 %v1153, %v1147
    %v1562 = vpack.c.b16 %v1154, %v1148
    %v1563 = vpack.c.b16 %v1155, %v1149
    %v1564 = vpack.c.b16 %v1156, %v1150
    %v1565 = vpack.c.b16 %v1157, %v1151
    %v1566 = vpack.c.b16 %v1164, %v1158
    %v1567 = vpack.c.b16 %v1165, %v1159
    %v1568 = vpack.c.b16 %v1166, %v1160
    %v1569 = vpack.c.b16 %v1167, %v1161
    %v1570 = vpack.c.b16 %v1168, %v1162
    %v1571 = vpack.c.b16 %v1169, %v1163
    %v1572 = vpack.c.b16 %v1176, %v1170
    %v1573 = vpack.c.b16 %v1177, %v1171
    %v1574 = vpack.c.b16 %v1178, %v1172
    %v1575 = vpack.c.b16 %v1179, %v1173
    %v1576 = vpack.c.b16 %v1180, %v1174
    %v1577 = vpack.c.b16 %v1181, %v1175
    %v1578 = vpack.c.b16 %v1188, %v1182
    %v1579 = vpack.c.b16 %v1189, %v1183
    %v1580 = vpack.c.b16 %v1190, %v1184
    %v1581 = vpack.c.b16 %v1191, %v1185
    %v1582 = vpack.c.b16 %v1192, %v1186
    %v1583 = vpack.c.b16 %v1193, %v1187
    %v1584 = vpack.c.b16 %v1200, %v1194
    %v1585 = vpack.c.b16 %v1201, %v1195
    %v1586 = vpack.c.b16 %v1202, %v1196
    %v1587 = vpack.c.b16 %v1203, %v1197
    %v1588 = vpack.c.b16 %v1204, %v1198
    %v1589 = vpack.c.b16 %v1205, %v1199
    %v1590 = vpack.c.b16 %v1212, %v1206
    %v1591 = vpack.c.b16 %v1213, %v1207
    %v1592 = vpack.c.b16 %v1214, %v1208
    %v1593 = vpack.c.b16 %v1215, %v1209
    %v1594 = vpack.c.b16 %v1216, %v1210
    %v1595 = vpack.c.b16 %v1217, %v1211
    %v1596 = vpack.c.b16 %v1224, %v1218
    %v1597 = vpack.c.b16 %v1225, %v1219
    %v1598 = vpack.c.b16 %v1226, %v1220
    %v1599 = vpack.c.b16 %v1227, %v1221
    %v1600 = vpack.c.b16 %v1228, %v1222
    %v1601 = vpack.c.b16 %v1229, %v1223
    %v1602 = vpack.c.b16 %v1236, %v1230
    %v1603 = vpack.c.b16 %v1237, %v1231
    %v1604 = vpack.c.b16 %v1238, %v1232
    %v1605 = vpack.c.b16 %v1239, %v1233
    %v1606 = vpack.c.b16 %v1240, %v1234
    %v1607 = vpack.c.b16 %v1241, %v1235
    %v1608 = vpack.c.b16 %v1248, %v1242
    %v1609 = vpack.c.b16 %v1249, %v1243
    %v1610 = vpack.c.b16 %v1250, %v1244
    %v1611 = vpack.c.b16 %v1251, %v1245
    %v1612 = vpack.c.b16 %v1252, %v1246
    %v1613 = vpack.c.b16 %v1253, %v1247
    %v1614 = vpack.c.b16 %v1260, %v1254
    %v1615 = vpack.c.b16 %v1261, %v1255
    %v1616 = vpack.c.b16 %v1262, %v1256
    %v1617 = vpack.c.b16 %v1263, %v1257
    %v1618 = vpack.c.b16 %v1264, %v1258
    %v1619 = vpack.c.b16 %v1265, %v1259
    %v1620 = vpack.c.b16 %v1272, %v1266
    %v1621 = vpack.c.b16 %v1273, %v1267
    %v1622 = vpack.c.b16 %v1274, %v1268
    %v1623 = vpack.c.b16 %v1275, %v1269
    %v1624 = vpack.c.b16 %v1276, %v1270
    %v1625 = vpack.c.b16 %v1277, %v1271
    %v1626 = vpack.c.b16 %v1284, %v1278
    %v1627 = vpack.c.b16 %v1285, %v1279
    %v1628 = vpack.c.b16 %v1286, %v1280
    %v1629 = vpack.c.b16 %v1287, %v1281
    %v1630 = vpack.c.b16 %v1288, %v1282
    %v1631 = vpack.c.b16 %v1289, %v1283
    %v1632 = vpack.c.b16 %v1296, %v1290
    %v1633 = vpack.c.b16 %v1297, %v1291
    %v1634 = vpack.c.b16 %v1298, %v1292
    %v1635 = vpack.c.b16 %v1299, %v1293
    %v1636 = vpack.c.b16 %v1300, %v1294
    %v1637 = vpack.c.b16 %v1301, %v1295
    %v1638 = vpack.c.b16 %v1308, %v1302
    %v1639 = vpack.c.b16 %v1309, %v1303
    %v1640 = vpack.c.b16 %v1310, %v1304
    %v1641 = vpack.c.b16 %v1311, %v1305
    %v1642 = vpack.c.b16 %v1312, %v1306
    %v1643 = vpack.c.b16 %v1313, %v1307
    %v1644 = vpack.c.b16 %v1320, %v1314
    %v1645 = vpack.c.b16 %v1321, %v1315
    %v1646 = vpack.c.b16 %v1322, %v1316
    %v1647 = vpack.c.b16 %v1323, %v1317
    %v1648 = vpack.c.b16 %v1324, %v1318
    %v1649 = vpack.c.b16 %v1325, %v1319
    %v1650 = vpack.c.b16 %v1332, %v1326
    %v1651 = vpack.c.b16 %v1333, %v1327
    %v1652 = vpack.c.b16 %v1334, %v1328
    %v1653 = vpack.c.b16 %v1335, %v1329
    %v1654 = vpack.c.b16 %v1336, %v1330
    %v1655 = vpack.c.b16 %v1337, %v1331
    %v1656 = vpack.c.b16 %v1344, %v1338
    %v1657 = vpack.c.b16 %v1345, %v1339
    %v1658 = vpack.c.b16 %v1346, %v1340
    %v1659 = vpack.c.b16 %v1347, %v1341
    %v1660 = vpack.c.b16 %v1348, %v1342
    %v1661 = vpack.c.b16 %v1349, %v1343
    %v1662 = vpack.c.b16 %v1356, %v1350
    %v1663 = vpack.c.b16 %v1357, %v1351
    %v1664 = vpack.c.b16 %v1358, %v1352
    %v1665 = vpack.c.b16 %v1359, %v1353
    %v1666 = vpack.c.b16 %v1360, %v1354
    %v1667 = vpack.c.b16 %v1361, %v1355
    %v1668 = vpack.c.b16 %v1368, %v1362
    %v1669 = vpack.c.b16 %v1369, %v1363
    %v1670 = vpack.c.b16 %v1370, %v1364
    %v1671 = vpack.c.b16 %v1371, %v1365
    %v1672 = vpack.c.b16 %v1372, %v1366
    %v1673 = vpack.c.b16 %v1373, %v1367
    %v1674 = vpack.c.b16 %v1380, %v1374
    %v1675 = vpack.c.b16 %v1381, %v1375
    %v1676 = vpack.c.b16 %v1382, %v1376
    %v1677 = vpack.c.b16 %v1383, %v1377
    %v1678 = vpack.c.b16 %v1384, %v1378
    %v1679 = vpack.c.b16 %v1385, %v1379
    %v1680 = vpack.c.b16 %v1392, %v1386
    %v1681 = vpack.c.b16 %v1393, %v1387
    %v1682 = vpack.c.b16 %v1394, %v1388
    %v1683 = vpack.c.b16 %v1395, %v1389
    %v1684 = vpack.c.b16 %v1396, %v1390
    %v1685 = vpack.c.b16 %v1397, %v1391
    %1974 = vmatprep.subr.bf16.mxu0 %v1399
    %1975 = vmatpush1.bf16.msra.mxu0 %v1398
    %1976 = vmatprep.subr.bf16.mxu0 %v1405
    %1977 = vmatpush1.bf16.msra.mxu0 %v1404
    %1978 = vmatprep.subr.bf16.mxu0 %v1411
    %1979 = vmatpush1.bf16.msra.mxu0 %v1410
    %1980 = vmatprep.subr.bf16.mxu0 %v1417
    %1981 = vmatpush1.bf16.msra.mxu0 %v1416
    %1982 = vmatprep.subr.bf16.mxu0 %v1423
    %1983 = vmatpush1.bf16.msra.mxu0 %v1422
    %1984 = vmatprep.subr.bf16.mxu0 %v1429
    %1985 = vmatpush1.bf16.msra.mxu0 %v1428
    %1986 = vmatprep.subr.bf16.mxu0 %v1435
    %1987 = vmatpush1.bf16.msra.mxu0 %v1434
    %1988 = vmatprep.subr.bf16.mxu0 %v1441
    %1989 = vmatpush1.bf16.msra.mxu0 %v1440
    %1990 = vmatprep.subr.bf16.mxu0 %v1447
    %1991 = vmatpush1.bf16.msra.mxu0 %v1446
    %1992 = vmatprep.subr.bf16.mxu0 %v1453
    %1993 = vmatpush1.bf16.msra.mxu0 %v1452
    %1994 = vmatprep.subr.bf16.mxu0 %v1459
    %1995 = vmatpush1.bf16.msra.mxu0 %v1458
    %1996 = vmatprep.subr.bf16.mxu0 %v1465
    %1997 = vmatpush1.bf16.msra.mxu0 %v1464
    %1998 = vmatprep.subr.bf16.mxu0 %v1471
    %1999 = vmatpush1.bf16.msra.mxu0 %v1470
    %2000 = vmatprep.subr.bf16.mxu0 %v1477
    %2001 = vmatpush1.bf16.msra.mxu0 %v1476
    %2002 = vmatprep.subr.bf16.mxu0 %v1483
    %2003 = vmatpush1.bf16.msra.mxu0 %v1482
    %2004 = vmatprep.subr.bf16.mxu0 %v1489
    %2005 = vmatpush1.bf16.msra.mxu0 %v1488
    %2006 = vmatprep.mubr.bf16.mxu0 %v523
    %2007 = vmatmul.mubr.bf16.gmra.mrb[0].mxu0 %v522
    %v2008 = vpop.f32.mrb[0].mxu0
    %v2009 = vadd.f32 %v458, %v2008
    %v2010 = vpop.f32.mrb[0].mxu0
    %v2011 = vadd.f32 %v462, %v2010
    %v2012 = vpop.f32.mrb[0].mxu0
    %v2013 = vpop.f32.mrb[0].mxu0
    %2014 = vdwg.mxu0
    %2015 = vmatprep.subr.bf16.mxu0 %v1495
    %2016 = vmatpush1.bf16.msra.mxu0 %v1494
    %2017 = vmatprep.subr.bf16.mxu0 %v1501
    %2018 = vmatpush1.bf16.msra.mxu0 %v1500
    %2019 = vmatprep.subr.bf16.mxu0 %v1507
    %2020 = vmatpush1.bf16.msra.mxu0 %v1506
    %2021 = vmatprep.subr.bf16.mxu0 %v1513
    %2022 = vmatpush1.bf16.msra.mxu0 %v1512
    %2023 = vmatprep.subr.bf16.mxu0 %v1519
    %2024 = vmatpush1.bf16.msra.mxu0 %v1518
    %2025 = vmatprep.subr.bf16.mxu0 %v1525
    %2026 = vmatpush1.bf16.msra.mxu0 %v1524
    %2027 = vmatprep.subr.bf16.mxu0 %v1531
    %2028 = vmatpush1.bf16.msra.mxu0 %v1530
    %2029 = vmatprep.subr.bf16.mxu0 %v1537
    %2030 = vmatpush1.bf16.msra.mxu0 %v1536
    %2031 = vmatprep.subr.bf16.mxu0 %v1543
    %2032 = vmatpush1.bf16.msra.mxu0 %v1542
    %2033 = vmatprep.subr.bf16.mxu0 %v1549
    %2034 = vmatpush1.bf16.msra.mxu0 %v1548
    %2035 = vmatprep.subr.bf16.mxu0 %v1555
    %2036 = vmatpush1.bf16.msra.mxu0 %v1554
    %2037 = vmatprep.subr.bf16.mxu0 %v1561
    %2038 = vmatpush1.bf16.msra.mxu0 %v1560
    %2039 = vmatprep.subr.bf16.mxu0 %v1567
    %2040 = vmatpush1.bf16.msra.mxu0 %v1566
    %2041 = vmatprep.subr.bf16.mxu0 %v1573
    %2042 = vmatpush1.bf16.msra.mxu0 %v1572
    %2043 = vmatprep.subr.bf16.mxu0 %v1579
    %2044 = vmatpush1.bf16.msra.mxu0 %v1578
    %2045 = vmatprep.subr.bf16.mxu0 %v1585
    %2046 = vmatpush1.bf16.msra.mxu0 %v1584
    %2047 = vmatprep.mubr.bf16.mxu0 %v525
    %2048 = vmatmul.mubr.bf16.gmra.mrb[0].mxu0 %v524
    %v2049 = vpop.f32.mrb[0].mxu0
    %v2050 = vadd.f32 %v2009, %v2049
    %v2051 = vpop.f32.mrb[0].mxu0
    %v2052 = vadd.f32 %v2011, %v2051
    %v2053 = vpop.f32.mrb[0].mxu0
    %v2054 = vpop.f32.mrb[0].mxu0
    %2055 = vdwg.mxu0
    %2056 = vmatprep.subr.bf16.mxu0 %v1591
    %2057 = vmatpush1.bf16.msra.mxu0 %v1590
    %2058 = vmatprep.subr.bf16.mxu0 %v1597
    %2059 = vmatpush1.bf16.msra.mxu0 %v1596
    %2060 = vmatprep.subr.bf16.mxu0 %v1603
    %2061 = vmatpush1.bf16.msra.mxu0 %v1602
    %2062 = vmatprep.subr.bf16.mxu0 %v1609
    %2063 = vmatpush1.bf16.msra.mxu0 %v1608
    %2064 = vmatprep.subr.bf16.mxu0 %v1615
    %2065 = vmatpush1.bf16.msra.mxu0 %v1614
    %2066 = vmatprep.subr.bf16.mxu0 %v1621
    %2067 = vmatpush1.bf16.msra.mxu0 %v1620
    %2068 = vmatprep.subr.bf16.mxu0 %v1627
    %2069 = vmatpush1.bf16.msra.mxu0 %v1626
    %2070 = vmatprep.subr.bf16.mxu0 %v1633
    %2071 = vmatpush1.bf16.msra.mxu0 %v1632
    %2072 = vmatprep.subr.bf16.mxu0 %v1639
    %2073 = vmatpush1.bf16.msra.mxu0 %v1638
    %2074 = vmatprep.subr.bf16.mxu0 %v1645
    %2075 = vmatpush1.bf16.msra.mxu0 %v1644
    %2076 = vmatprep.subr.bf16.mxu0 %v1651
    %2077 = vmatpush1.bf16.msra.mxu0 %v1650
    %2078 = vmatprep.subr.bf16.mxu0 %v1657
    %2079 = vmatpush1.bf16.msra.mxu0 %v1656
    %2080 = vmatprep.subr.bf16.mxu0 %v1663
    %2081 = vmatpush1.bf16.msra.mxu0 %v1662
    %2082 = vmatprep.subr.bf16.mxu0 %v1669
    %2083 = vmatpush1.bf16.msra.mxu0 %v1668
    %2084 = vmatprep.subr.bf16.mxu0 %v1675
    %2085 = vmatpush1.bf16.msra.mxu0 %v1674
    %2086 = vmatprep.subr.bf16.mxu0 %v1681
    %2087 = vmatpush1.bf16.msra.mxu0 %v1680
    %2088 = vmatprep.mubr.bf16.mxu0 %v527
    %2089 = vmatmul.mubr.bf16.gmra.mrb[0].mxu0 %v526
    %v2090 = vpop.f32.mrb[0].mxu0
    %v2091 = vadd.f32 %v2050, %v2090
    %v2092 = vpop.f32.mrb[0].mxu0
    %v2093 = vadd.f32 %v2052, %v2092
    %v2094 = vpop.f32.mrb[0].mxu0
    %v2095 = vpop.f32.mrb[0].mxu0
    %2096 = vdwg.mxu0
    %2097 = vmatprep.subr.bf16.mxu0 %v1401
    %2098 = vmatpush1.bf16.msra.mxu0 %v1400
    %2099 = vmatprep.subr.bf16.mxu0 %v1407
    %2100 = vmatpush1.bf16.msra.mxu0 %v1406
    %2101 = vmatprep.subr.bf16.mxu0 %v1413
    %2102 = vmatpush1.bf16.msra.mxu0 %v1412
    %2103 = vmatprep.subr.bf16.mxu0 %v1419
    %2104 = vmatpush1.bf16.msra.mxu0 %v1418
    %2105 = vmatprep.subr.bf16.mxu0 %v1425
    %2106 = vmatpush1.bf16.msra.mxu0 %v1424
    %2107 = vmatprep.subr.bf16.mxu0 %v1431
    %2108 = vmatpush1.bf16.msra.mxu0 %v1430
    %2109 = vmatprep.subr.bf16.mxu0 %v1437
    %2110 = vmatpush1.bf16.msra.mxu0 %v1436
    %2111 = vmatprep.subr.bf16.mxu0 %v1443
    %2112 = vmatpush1.bf16.msra.mxu0 %v1442
    %2113 = vmatprep.subr.bf16.mxu0 %v1449
    %2114 = vmatpush1.bf16.msra.mxu0 %v1448
    %2115 = vmatprep.subr.bf16.mxu0 %v1455
    %2116 = vmatpush1.bf16.msra.mxu0 %v1454
    %2117 = vmatprep.subr.bf16.mxu0 %v1461
    %2118 = vmatpush1.bf16.msra.mxu0 %v1460
    %2119 = vmatprep.subr.bf16.mxu0 %v1467
    %2120 = vmatpush1.bf16.msra.mxu0 %v1466
    %2121 = vmatprep.subr.bf16.mxu0 %v1473
    %2122 = vmatpush1.bf16.msra.mxu0 %v1472
    %2123 = vmatprep.subr.bf16.mxu0 %v1479
    %2124 = vmatpush1.bf16.msra.mxu0 %v1478
    %2125 = vmatprep.subr.bf16.mxu0 %v1485
    %2126 = vmatpush1.bf16.msra.mxu0 %v1484
    %2127 = vmatprep.subr.bf16.mxu0 %v1491
    %2128 = vmatpush1.bf16.msra.mxu0 %v1490
    %2129 = vmatprep.mubr.bf16.mxu0 %v523
    %2130 = vmatmul.mubr.bf16.gmra.mrb[0].mxu0 %v522
    %v2131 = vpop.f32.mrb[0].mxu0
    %v2132 = vadd.f32 %v466, %v2131
    %v2133 = vpop.f32.mrb[0].mxu0
    %v2134 = vadd.f32 %v470, %v2133
    %v2135 = vpop.f32.mrb[0].mxu0
    %v2136 = vpop.f32.mrb[0].mxu0
    %2137 = vdwg.mxu0
    %2138 = vmatprep.subr.bf16.mxu0 %v1497
    %2139 = vmatpush1.bf16.msra.mxu0 %v1496
    %2140 = vmatprep.subr.bf16.mxu0 %v1503
    %2141 = vmatpush1.bf16.msra.mxu0 %v1502
    %2142 = vmatprep.subr.bf16.mxu0 %v1509
    %2143 = vmatpush1.bf16.msra.mxu0 %v1508
    %2144 = vmatprep.subr.bf16.mxu0 %v1515
    %2145 = vmatpush1.bf16.msra.mxu0 %v1514
    %2146 = vmatprep.subr.bf16.mxu0 %v1521
    %2147 = vmatpush1.bf16.msra.mxu0 %v1520
    %2148 = vmatprep.subr.bf16.mxu0 %v1527
    %2149 = vmatpush1.bf16.msra.mxu0 %v1526
    %2150 = vmatprep.subr.bf16.mxu0 %v1533
    %2151 = vmatpush1.bf16.msra.mxu0 %v1532
    %2152 = vmatprep.subr.bf16.mxu0 %v1539
    %2153 = vmatpush1.bf16.msra.mxu0 %v1538
    %2154 = vmatprep.subr.bf16.mxu0 %v1545
    %2155 = vmatpush1.bf16.msra.mxu0 %v1544
    %2156 = vmatprep.subr.bf16.mxu0 %v1551
    %2157 = vmatpush1.bf16.msra.mxu0 %v1550
    %2158 = vmatprep.subr.bf16.mxu0 %v1557
    %2159 = vmatpush1.bf16.msra.mxu0 %v1556
    %2160 = vmatprep.subr.bf16.mxu0 %v1563
    %2161 = vmatpush1.bf16.msra.mxu0 %v1562
    %2162 = vmatprep.subr.bf16.mxu0 %v1569
    %2163 = vmatpush1.bf16.msra.mxu0 %v1568
    %2164 = vmatprep.subr.bf16.mxu0 %v1575
    %2165 = vmatpush1.bf16.msra.mxu0 %v1574
    %2166 = vmatprep.subr.bf16.mxu0 %v1581
    %2167 = vmatpush1.bf16.msra.mxu0 %v1580
    %2168 = vmatprep.subr.bf16.mxu0 %v1587
    %2169 = vmatpush1.bf16.msra.mxu0 %v1586
    %2170 = vmatprep.mubr.bf16.mxu0 %v525
    %2171 = vmatmul.mubr.bf16.gmra.mrb[0].mxu0 %v524
    %v2172 = vpop.f32.mrb[0].mxu0
    %v2173 = vadd.f32 %v2132, %v2172
    %v2174 = vpop.f32.mrb[0].mxu0
    %v2175 = vadd.f32 %v2134, %v2174
    %v2176 = vpop.f32.mrb[0].mxu0
    %v2177 = vpop.f32.mrb[0].mxu0
    %2178 = vdwg.mxu0
    %2179 = vmatprep.subr.bf16.mxu0 %v1593
    %2180 = vmatpush1.bf16.msra.mxu0 %v1592
    %2181 = vmatprep.subr.bf16.mxu0 %v1599
    %2182 = vmatpush1.bf16.msra.mxu0 %v1598
    %2183 = vmatprep.subr.bf16.mxu0 %v1605
    %2184 = vmatpush1.bf16.msra.mxu0 %v1604
    %2185 = vmatprep.subr.bf16.mxu0 %v1611
    %2186 = vmatpush1.bf16.msra.mxu0 %v1610
    %2187 = vmatprep.subr.bf16.mxu0 %v1617
    %2188 = vmatpush1.bf16.msra.mxu0 %v1616
    %2189 = vmatprep.subr.bf16.mxu0 %v1623
    %2190 = vmatpush1.bf16.msra.mxu0 %v1622
    %2191 = vmatprep.subr.bf16.mxu0 %v1629
    %2192 = vmatpush1.bf16.msra.mxu0 %v1628
    %2193 = vmatprep.subr.bf16.mxu0 %v1635
    %2194 = vmatpush1.bf16.msra.mxu0 %v1634
    %2195 = vmatprep.subr.bf16.mxu0 %v1641
    %2196 = vmatpush1.bf16.msra.mxu0 %v1640
    %2197 = vmatprep.subr.bf16.mxu0 %v1647
    %2198 = vmatpush1.bf16.msra.mxu0 %v1646
    %2199 = vmatprep.subr.bf16.mxu0 %v1653
    %2200 = vmatpush1.bf16.msra.mxu0 %v1652
    %2201 = vmatprep.subr.bf16.mxu0 %v1659
    %2202 = vmatpush1.bf16.msra.mxu0 %v1658
    %2203 = vmatprep.subr.bf16.mxu0 %v1665
    %2204 = vmatpush1.bf16.msra.mxu0 %v1664
    %2205 = vmatprep.subr.bf16.mxu0 %v1671
    %2206 = vmatpush1.bf16.msra.mxu0 %v1670
    %2207 = vmatprep.subr.bf16.mxu0 %v1677
    %2208 = vmatpush1.bf16.msra.mxu0 %v1676
    %2209 = vmatprep.subr.bf16.mxu0 %v1683
    %2210 = vmatpush1.bf16.msra.mxu0 %v1682
    %2211 = vmatprep.mubr.bf16.mxu0 %v527
    %2212 = vmatmul.mubr.bf16.gmra.mrb[0].mxu0 %v526
    %v2213 = vpop.f32.mrb[0].mxu0
    %v2214 = vadd.f32 %v2173, %v2213
    %v2215 = vpop.f32.mrb[0].mxu0
    %v2216 = vadd.f32 %v2175, %v2215
    %v2217 = vpop.f32.mrb[0].mxu0
    %v2218 = vpop.f32.mrb[0].mxu0
    %2219 = vdwg.mxu0
    %2220 = vmatprep.subr.bf16.mxu0 %v1403
    %2221 = vmatpush1.bf16.msra.mxu0 %v1402
    %2222 = vmatprep.subr.bf16.mxu0 %v1409
    %2223 = vmatpush1.bf16.msra.mxu0 %v1408
    %2224 = vmatprep.subr.bf16.mxu0 %v1415
    %2225 = vmatpush1.bf16.msra.mxu0 %v1414
    %2226 = vmatprep.subr.bf16.mxu0 %v1421
    %2227 = vmatpush1.bf16.msra.mxu0 %v1420
    %2228 = vmatprep.subr.bf16.mxu0 %v1427
    %2229 = vmatpush1.bf16.msra.mxu0 %v1426
    %2230 = vmatprep.subr.bf16.mxu0 %v1433
    %2231 = vmatpush1.bf16.msra.mxu0 %v1432
    %2232 = vmatprep.subr.bf16.mxu0 %v1439
    %2233 = vmatpush1.bf16.msra.mxu0 %v1438
    %2234 = vmatprep.subr.bf16.mxu0 %v1445
    %2235 = vmatpush1.bf16.msra.mxu0 %v1444
    %2236 = vmatprep.subr.bf16.mxu0 %v1451
    %2237 = vmatpush1.bf16.msra.mxu0 %v1450
    %2238 = vmatprep.subr.bf16.mxu0 %v1457
    %2239 = vmatpush1.bf16.msra.mxu0 %v1456
    %2240 = vmatprep.subr.bf16.mxu0 %v1463
    %2241 = vmatpush1.bf16.msra.mxu0 %v1462
    %2242 = vmatprep.subr.bf16.mxu0 %v1469
    %2243 = vmatpush1.bf16.msra.mxu0 %v1468
    %2244 = vmatprep.subr.bf16.mxu0 %v1475
    %2245 = vmatpush1.bf16.msra.mxu0 %v1474
    %2246 = vmatprep.subr.bf16.mxu0 %v1481
    %2247 = vmatpush1.bf16.msra.mxu0 %v1480
    %2248 = vmatprep.subr.bf16.mxu0 %v1487
    %2249 = vmatpush1.bf16.msra.mxu0 %v1486
    %2250 = vmatprep.subr.bf16.mxu0 %v1493
    %2251 = vmatpush1.bf16.msra.mxu0 %v1492
    %2252 = vmatprep.mubr.bf16.mxu0 %v523
    %2253 = vmatmul.mubr.bf16.gmra.mrb[0].mxu0 %v522
    %v2254 = vpop.f32.mrb[0].mxu0
    %v2255 = vadd.f32 %v474, %v2254
    %v2256 = vpop.f32.mrb[0].mxu0
    %v2257 = vadd.f32 %v478, %v2256
    %v2258 = vpop.f32.mrb[0].mxu0
    %v2259 = vpop.f32.mrb[0].mxu0
    %2260 = vdwg.mxu0
    %2261 = vmatprep.subr.bf16.mxu0 %v1499
    %2262 = vmatpush1.bf16.msra.mxu0 %v1498
    %2263 = vmatprep.subr.bf16.mxu0 %v1505
    %2264 = vmatpush1.bf16.msra.mxu0 %v1504
    %2265 = vmatprep.subr.bf16.mxu0 %v1511
    %2266 = vmatpush1.bf16.msra.mxu0 %v1510
    %2267 = vmatprep.subr.bf16.mxu0 %v1517
    %2268 = vmatpush1.bf16.msra.mxu0 %v1516
    %2269 = vmatprep.subr.bf16.mxu0 %v1523
    %2270 = vmatpush1.bf16.msra.mxu0 %v1522
    %2271 = vmatprep.subr.bf16.mxu0 %v1529
    %2272 = vmatpush1.bf16.msra.mxu0 %v1528
    %2273 = vmatprep.subr.bf16.mxu0 %v1535
    %2274 = vmatpush1.bf16.msra.mxu0 %v1534
    %2275 = vmatprep.subr.bf16.mxu0 %v1541
    %2276 = vmatpush1.bf16.msra.mxu0 %v1540
    %2277 = vmatprep.subr.bf16.mxu0 %v1547
    %2278 = vmatpush1.bf16.msra.mxu0 %v1546
    %2279 = vmatprep.subr.bf16.mxu0 %v1553
    %2280 = vmatpush1.bf16.msra.mxu0 %v1552
    %2281 = vmatprep.subr.bf16.mxu0 %v1559
    %2282 = vmatpush1.bf16.msra.mxu0 %v1558
    %2283 = vmatprep.subr.bf16.mxu0 %v1565
    %2284 = vmatpush1.bf16.msra.mxu0 %v1564
    %2285 = vmatprep.subr.bf16.mxu0 %v1571
    %2286 = vmatpush1.bf16.msra.mxu0 %v1570
    %2287 = vmatprep.subr.bf16.mxu0 %v1577
    %2288 = vmatpush1.bf16.msra.mxu0 %v1576
    %2289 = vmatprep.subr.bf16.mxu0 %v1583
    %2290 = vmatpush1.bf16.msra.mxu0 %v1582
    %2291 = vmatprep.subr.bf16.mxu0 %v1589
    %2292 = vmatpush1.bf16.msra.mxu0 %v1588
    %2293 = vmatprep.mubr.bf16.mxu0 %v525
    %2294 = vmatmul.mubr.bf16.gmra.mrb[0].mxu0 %v524
    %v2295 = vpop.f32.mrb[0].mxu0
    %v2296 = vadd.f32 %v2255, %v2295
    %v2297 = vpop.f32.mrb[0].mxu0
    %v2298 = vadd.f32 %v2257, %v2297
    %v2299 = vpop.f32.mrb[0].mxu0
    %v2300 = vpop.f32.mrb[0].mxu0
    %2301 = vdwg.mxu0
    %2302 = vmatprep.subr.bf16.mxu0 %v1595
    %2303 = vmatpush1.bf16.msra.mxu0 %v1594
    %2304 = vmatprep.subr.bf16.mxu0 %v1601
    %2305 = vmatpush1.bf16.msra.mxu0 %v1600
    %2306 = vmatprep.subr.bf16.mxu0 %v1607
    %2307 = vmatpush1.bf16.msra.mxu0 %v1606
    %2308 = vmatprep.subr.bf16.mxu0 %v1613
    %2309 = vmatpush1.bf16.msra.mxu0 %v1612
    %2310 = vmatprep.subr.bf16.mxu0 %v1619
    %2311 = vmatpush1.bf16.msra.mxu0 %v1618
    %2312 = vmatprep.subr.bf16.mxu0 %v1625
    %2313 = vmatpush1.bf16.msra.mxu0 %v1624
    %2314 = vmatprep.subr.bf16.mxu0 %v1631
    %2315 = vmatpush1.bf16.msra.mxu0 %v1630
    %2316 = vmatprep.subr.bf16.mxu0 %v1637
    %2317 = vmatpush1.bf16.msra.mxu0 %v1636
    %2318 = vmatprep.subr.bf16.mxu0 %v1643
    %2319 = vmatpush1.bf16.msra.mxu0 %v1642
    %2320 = vmatprep.subr.bf16.mxu0 %v1649
    %2321 = vmatpush1.bf16.msra.mxu0 %v1648
    %2322 = vmatprep.subr.bf16.mxu0 %v1655
    %2323 = vmatpush1.bf16.msra.mxu0 %v1654
    %2324 = vmatprep.subr.bf16.mxu0 %v1661
    %2325 = vmatpush1.bf16.msra.mxu0 %v1660
    %2326 = vmatprep.subr.bf16.mxu0 %v1667
    %2327 = vmatpush1.bf16.msra.mxu0 %v1666
    %2328 = vmatprep.subr.bf16.mxu0 %v1673
    %2329 = vmatpush1.bf16.msra.mxu0 %v1672
    %2330 = vmatprep.subr.bf16.mxu0 %v1679
    %2331 = vmatpush1.bf16.msra.mxu0 %v1678
    %2332 = vmatprep.subr.bf16.mxu0 %v1685
    %2333 = vmatpush1.bf16.msra.mxu0 %v1684
    %2334 = vmatprep.mubr.bf16.mxu0 %v527
    %2335 = vmatmul.mubr.bf16.gmra.mrb[0].mxu0 %v526
    %v2336 = vpop.f32.mrb[0].mxu0
    %v2337 = vadd.f32 %v2296, %v2336
    %v2338 = vpop.f32.mrb[0].mxu0
    %v2339 = vadd.f32 %v2298, %v2338
    %v2340 = vpop.f32.mrb[0].mxu0
    %v2341 = vpop.f32.mrb[0].mxu0
    %2342 = vdwg.mxu0
    %v2343 = vtanh.pop %v2091
    %v2344 = vtanh.pop %v2093
    %v2345 = vtanh.pop %v2214
    %v2346 = vtanh.pop %v2216
    %v2347 = vtanh.pop %v2337
    %v2348 = vtanh.pop %v2339
    %v2349 = vpack.c.bf16 %v2343, %v2343
    %v2350 = vpack.c.bf16 %v2344, %v2344
    %v2351 = vpack.c.bf16 %v2345, %v2345
    %v2352 = vpack.c.bf16 %v2346, %v2346
    %v2353 = vpack.c.bf16 %v2347, %v2347
    %v2354 = vpack.c.bf16 %v2348, %v2348
    %v2355 = vld [vmem:[#allocation8] sm:$0xff]
    %v2356 = vld [vmem:[#allocation8 + $0x8] sm:$0xf]
    %v2357 = vld [vmem:[#allocation10] sm:$0x1]
    %v2359 = vlaneseq
    %v2360 = vshrl.u32 %v2359, 7
    %v2361 = vsub.s32 0, %v2360
    %v2362 = vrot.slane %v2357, %v2361
    %v2366 = vcombine.high %v2355, %v2355
    %v2368 = vunpack.c.l.s4 1983009808
    %v2369 = vunpack.c.0.s8 %v2368
    %v2370 = vlaneseq
    %v2371 = vshrl.u32 %v2370, 7
    %v2372 = vsub.s32 %v2369, %v2371
    %v2373 = vrot.slane %v2355, %v2372
    %v2375 = vunpack.c.l.s4 1983009808
    %v2376 = vunpack.c.0.s8 %v2375
    %v2377 = vlaneseq
    %v2378 = vshrl.u32 %v2377, 7
    %v2379 = vsub.s32 %v2376, %v2378
    %v2380 = vrot.slane %v2366, %v2379
    %v2381 = vcombine.high %v2373, %v2373
    %v2382 = vcombine.high %v2380, %v2380
    %v2384 = vunpack.c.l.s4 1983009808
    %v2385 = vunpack.c.0.s8 %v2384
    %v2386 = vlaneseq
    %v2387 = vshrl.u32 %v2386, 7
    %v2388 = vsub.s32 %v2385, %v2387
    %v2389 = vrot.slane %v2356, %v2388
    %v2390 = vcombine.high %v2389, %v2389
    %2397 = vmatprep.subr.bf16.mxu0 %v2381
    %2398 = vmatpush1.bf16.xpose.msra.mxu0 %v2373
    %2399 = vmatprep.subr.bf16.mxu0 0
    %2400 = vmatpush1.bf16.xpose.msra.mxu0 0
    %2401 = vmatprep.subr.bf16.mxu0 0
    %2402 = vmatpush1.bf16.xpose.msra.mxu0 0
    %2403 = vmatprep.subr.bf16.mxu0 0
    %2404 = vmatpush1.bf16.xpose.msra.mxu0 0
    %2405 = vmatprep.subr.bf16.mxu0 0
    %2406 = vmatpush1.bf16.xpose.msra.mxu0 0
    %2407 = vmatprep.subr.bf16.mxu0 0
    %2408 = vmatpush1.bf16.xpose.msra.mxu0 0
    %2409 = vmatprep.subr.bf16.mxu0 0
    %2410 = vmatpush1.bf16.xpose.msra.mxu0 0
    %2411 = vmatprep.subr.bf16.mxu0 0
    %2412 = vmatpush1.bf16.xpose.msra.mxu0 0
    %2413 = vmatprep.subr.bf16.mxu0 0
    %2414 = vmatpush1.bf16.xpose.msra.mxu0 0
    %2415 = vmatprep.subr.bf16.mxu0 0
    %2416 = vmatpush1.bf16.xpose.msra.mxu0 0
    %2417 = vmatprep.subr.bf16.mxu0 0
    %2418 = vmatpush1.bf16.xpose.msra.mxu0 0
    %2419 = vmatprep.subr.bf16.mxu0 0
    %2420 = vmatpush1.bf16.xpose.msra.mxu0 0
    %2421 = vmatprep.subr.bf16.mxu0 0
    %2422 = vmatpush1.bf16.xpose.msra.mxu0 0
    %2423 = vmatprep.subr.bf16.mxu0 0
    %2424 = vmatpush1.bf16.xpose.msra.mxu0 0
    %2425 = vmatprep.subr.bf16.mxu0 0
    %2426 = vmatpush1.bf16.xpose.msra.mxu0 0
    %2427 = vmatprep.subr.bf16.mxu0 0
    %2428 = vmatpush1.bf16.xpose.msra.mxu0 0
    %2429 = vmatprep.mubr.bf16.mxu0 %v2350
    %2430 = vmatmul.mubr.bf16.gmra.mrb[0].mxu0 %v2349
    %v2431 = vpop.f32.mrb[0].mxu0
    %v2432 = vadd.f32 %v2362, %v2431
    %v2433 = vpop.f32.mrb[0].mxu0
    %v2434 = vpop.f32.mrb[0].mxu0
    %v2435 = vpop.f32.mrb[0].mxu0
    %2436 = vdwg.mxu0
    %2437 = vmatprep.subr.bf16.mxu0 %v2382
    %2438 = vmatpush1.bf16.xpose.msra.mxu0 %v2380
    %2439 = vmatprep.subr.bf16.mxu0 0
    %2440 = vmatpush1.bf16.xpose.msra.mxu0 0
    %2441 = vmatprep.subr.bf16.mxu0 0
    %2442 = vmatpush1.bf16.xpose.msra.mxu0 0
    %2443 = vmatprep.subr.bf16.mxu0 0
    %2444 = vmatpush1.bf16.xpose.msra.mxu0 0
    %2445 = vmatprep.subr.bf16.mxu0 0
    %2446 = vmatpush1.bf16.xpose.msra.mxu0 0
    %2447 = vmatprep.subr.bf16.mxu0 0
    %2448 = vmatpush1.bf16.xpose.msra.mxu0 0
    %2449 = vmatprep.subr.bf16.mxu0 0
    %2450 = vmatpush1.bf16.xpose.msra.mxu0 0
    %2451 = vmatprep.subr.bf16.mxu0 0
    %2452 = vmatpush1.bf16.xpose.msra.mxu0 0
    %2453 = vmatprep.subr.bf16.mxu0 0
    %2454 = vmatpush1.bf16.xpose.msra.mxu0 0
    %2455 = vmatprep.subr.bf16.mxu0 0
    %2456 = vmatpush1.bf16.xpose.msra.mxu0 0
    %2457 = vmatprep.subr.bf16.mxu0 0
    %2458 = vmatpush1.bf16.xpose.msra.mxu0 0
    %2459 = vmatprep.subr.bf16.mxu0 0
    %2460 = vmatpush1.bf16.xpose.msra.mxu0 0
    %2461 = vmatprep.subr.bf16.mxu0 0
    %2462 = vmatpush1.bf16.xpose.msra.mxu0 0
    %2463 = vmatprep.subr.bf16.mxu0 0
    %2464 = vmatpush1.bf16.xpose.msra.mxu0 0
    %2465 = vmatprep.subr.bf16.mxu0 0
    %2466 = vmatpush1.bf16.xpose.msra.mxu0 0
    %2467 = vmatprep.subr.bf16.mxu0 0
    %2468 = vmatpush1.bf16.xpose.msra.mxu0 0
    %2469 = vmatprep.mubr.bf16.mxu0 %v2352
    %2470 = vmatmul.mubr.bf16.gmra.mrb[0].mxu0 %v2351
    %v2471 = vpop.f32.mrb[0].mxu0
    %v2472 = vadd.f32 %v2432, %v2471
    %v2473 = vpop.f32.mrb[0].mxu0
    %v2474 = vpop.f32.mrb[0].mxu0
    %v2475 = vpop.f32.mrb[0].mxu0
    %2476 = vdwg.mxu0
    %2477 = vmatprep.subr.bf16.mxu0 %v2390
    %2478 = vmatpush1.bf16.xpose.msra.mxu0 %v2389
    %2479 = vmatprep.subr.bf16.mxu0 0
    %2480 = vmatpush1.bf16.xpose.msra.mxu0 0
    %2481 = vmatprep.subr.bf16.mxu0 0
    %2482 = vmatpush1.bf16.xpose.msra.mxu0 0
    %2483 = vmatprep.subr.bf16.mxu0 0
    %2484 = vmatpush1.bf16.xpose.msra.mxu0 0
    %2485 = vmatprep.subr.bf16.mxu0 0
    %2486 = vmatpush1.bf16.xpose.msra.mxu0 0
    %2487 = vmatprep.subr.bf16.mxu0 0
    %2488 = vmatpush1.bf16.xpose.msra.mxu0 0
    %2489 = vmatprep.subr.bf16.mxu0 0
    %2490 = vmatpush1.bf16.xpose.msra.mxu0 0
    %2491 = vmatprep.subr.bf16.mxu0 0
    %2492 = vmatpush1.bf16.xpose.msra.mxu0 0
    %2493 = vmatprep.subr.bf16.mxu0 0
    %2494 = vmatpush1.bf16.xpose.msra.mxu0 0
    %2495 = vmatprep.subr.bf16.mxu0 0
    %2496 = vmatpush1.bf16.xpose.msra.mxu0 0
    %2497 = vmatprep.subr.bf16.mxu0 0
    %2498 = vmatpush1.bf16.xpose.msra.mxu0 0
    %2499 = vmatprep.subr.bf16.mxu0 0
    %2500 = vmatpush1.bf16.xpose.msra.mxu0 0
    %2501 = vmatprep.subr.bf16.mxu0 0
    %2502 = vmatpush1.bf16.xpose.msra.mxu0 0
    %2503 = vmatprep.subr.bf16.mxu0 0
    %2504 = vmatpush1.bf16.xpose.msra.mxu0 0
    %2505 = vmatprep.subr.bf16.mxu0 0
    %2506 = vmatpush1.bf16.xpose.msra.mxu0 0
    %2507 = vmatprep.subr.bf16.mxu0 0
    %2508 = vmatpush1.bf16.xpose.msra.mxu0 0
    %2509 = vmatprep.mubr.bf16.mxu0 %v2354
    %2510 = vmatmul.mubr.bf16.gmra.mrb[0].mxu0 %v2353
    %v2511 = vpop.f32.mrb[0].mxu0
    %v2512 = vadd.f32 %v2472, %v2511
    %v2513 = vpop.f32.mrb[0].mxu0
    %v2514 = vpop.f32.mrb[0].mxu0
    %v2515 = vpop.f32.mrb[0].mxu0
    %2516 = vdwg.mxu0
    %vm2517 = vcmask 25600
    %2518 = vst.msk [vmem:[#allocation11] sm:$0x3] %vm2517, %v2512
    // Predicated region
    $region42: #{tpu_custom_call.1} parent=1 // pred_check
      _
    $region43: #{tpu_custom_call.1} parent=1 // pred_check_branch
      %2520 = sbr.rel (0) target = $region45
    $region44: #{tpu_custom_call.1} parent=1 // pred_region
      %s2522 = ssub.s32 32, 32
      %2523 = vsyncadd [#allocation4], %s2522
      %s2525 = sshll.u32 [#allocation11], 4
      %s2526 = int_to_ptr.vmem [resolvable:$true] %s2525
      %2528 = dma.vmem_to_hbm [thread:$0]  %s2526, 32, %s5, [#allocation4]
    $region45: #{tpu_custom_call.1} parent=1 // pred_fallthru
      _
    // Predicated region
    $region46: #{tpu_custom_call.1} parent=1 // pred_check
      _
    $region47: #{tpu_custom_call.1} parent=1 // pred_check_branch
      %2530 = sbr.rel (0) target = $region49
    $region48: #{tpu_custom_call.1} parent=1 // pred_region
      %2531 = dma.done [#allocation4], 32
    $region49: #{tpu_custom_call.1} parent=1 // pred_fallthru
      _
    %2532 = vsyncpa [#allocation3], 1
    %2533 = vsyncpa [#allocation6], 1
    %2534 = vsyncpa [#allocation9], 1
    %2535 = vsyncpa [#allocation4], 1

</llo_original>
